<compile_context>
chip_gen: v7x
topology: tpu7x:2x2x1
jax: 0.10.0
libtpu: 0.0.40
codegen_flags: <defaults>
</compile_context>

<pallas_src>
import functools
import math

import jax
import jax.numpy as jnp
from jax.experimental import pallas as pl
from jax.experimental.pallas import tpu as pltpu


def _layernorm(x, w, b, eps=1e-5):
    # x: (R, E) f32, w/b: (1, E) f32
    mu = jnp.mean(x, axis=-1, keepdims=True)
    var = jnp.mean(jnp.square(x - mu), axis=-1, keepdims=True)
    return (x - mu) * jax.lax.rsqrt(var + eps) * w + b


def encoder_layer_kernel(
    x_ref,                       # (B_tile, L, E)
    wqkv_ref, bqkv_ref,          # (E, 3E) bf16, (1, 3E) f32   fused lin0..2 + in_proj (q pre-scaled)
    wo_ref, bo_ref,              # (E, E)  bf16, (1, E)  f32   MHA out_proj
    w3_ref, b3_ref,              # (E, E)  bf16, (1, E)  f32   linears[3]
    n1w_ref, n1b_ref,            # (1, E) f32                  LayerNorm1
    n2w_ref, n2b_ref,            # (1, E) f32                  LayerNorm2
    w1_ref, b1_ref,              # (E, F) bf16, (1, F) f32     feed-forward 1
    w2_ref, b2_ref,              # (F, E) bf16, (1, E) f32     feed-forward 2
    o_ref,                       # (B_tile, L, E)
    *, num_heads,
):
    B, L, E = x_ref.shape
    H = num_heads
    hd = E // H
    R = B * L

    def mm(a, w_ref, b_ref=None):
        # a: f32 activations; weights are pre-transposed (in, out) and pre-cast.
        acc = jnp.dot(a.astype(w_ref.dtype), w_ref[...],
                      preferred_element_type=jnp.float32)
        if b_ref is not None:
            acc = acc + b_ref[...]
        return acc

    # ---- LayerNorm1 (f32) --------------------------------------------------
    x = x_ref[...].astype(jnp.float32).reshape(R, E)
    x = _layernorm(x, n1w_ref[...], n1b_ref[...])

    # ---- fused QKV projection: (lin0..2 composed with MHA in_proj) ----------
    qkv = mm(x, wqkv_ref, bqkv_ref)                      # (R, 3E) f32, q already scaled
    q = qkv[:, 0 * E:1 * E].astype(jnp.bfloat16).reshape(B, L, E)
    k = qkv[:, 1 * E:2 * E].astype(jnp.bfloat16).reshape(B, L, E)
    v = qkv[:, 2 * E:3 * E].astype(jnp.bfloat16).reshape(B, L, E)

    # ---- scaled dot-product attention, batched over B_tile per head ---------
    head_outs = []
    for h in range(H):                                   # static, small H
        lo = h * hd
        qh = q[:, :, lo:lo + hd]                         # (B, L, hd)
        kh = k[:, :, lo:lo + hd]
        vh = v[:, :, lo:lo + hd]
        s = jnp.einsum('bld,bmd->blm', qh, kh,
                       preferred_element_type=jnp.float32)          # (B, L, L)
        s = s - jnp.max(s, axis=-1, keepdims=True)
        p = jnp.exp(s)
        p = p * pl.reciprocal(jnp.sum(p, axis=-1, keepdims=True), approx=True)
        oh = jnp.einsum('blm,bmd->bld', p.astype(jnp.bfloat16), vh,
                        preferred_element_type=jnp.float32)          # (B, L, hd)
        head_outs.append(oh.reshape(R, hd))
    attn = jnp.concatenate(head_outs, axis=-1)           # (R, E) f32, register-level

    # ---- out_proj, residual through linears[3] ------------------------------
    a = mm(attn, wo_ref, bo_ref)                         # MHA out_proj
    y = a + mm(a, w3_ref, b3_ref)                        # a + linears[3](a); dropout = id

    # ---- LayerNorm2 + feed-forward residual ---------------------------------
    z = _layernorm(y, n2w_ref[...], n2b_ref[...])
    ff = jnp.maximum(mm(z, w1_ref, b1_ref), 0.0)
    ff = mm(ff, w2_ref, b2_ref)
    out = z + ff

    o_ref[...] = out.reshape(B, L, E).astype(o_ref.dtype)


def _prepare_weights(p, num_heads, E, compute_dtype):
    """Pre-transpose to (in, out), pre-compose lin0..2 with in_proj, pre-cast to bf16."""
    hd = E // num_heads
    scale = 1.0 / math.sqrt(hd)
    lw, lb = p["lin_w"], p["lin_b"]                      # (4,E,E), (4,E)
    ipw, ipb = p["in_proj_w"], p["in_proj_b"][0]         # (3E,E), (3E,)

    w_eff, b_eff = [], []
    for i in range(3):                                   # 0:q 1:k 2:v
        wi = ipw[i * E:(i + 1) * E]                      # (E, E)
        bi = ipb[i * E:(i + 1) * E]                      # (E,)
        W = (wi @ lw[i]).T                               # x @ W == (x @ lw[i].T) @ wi.T
        bvec = lb[i] @ wi.T + bi
        if i == 0:                                       # fold 1/sqrt(hd) into Q
            W = W * scale
            bvec = bvec * scale
        w_eff.append(W)
        b_eff.append(bvec)

    f32 = jnp.float32
    return {
        "w_qkv": jnp.concatenate(w_eff, axis=1).astype(compute_dtype),   # (E, 3E)
        "b_qkv": jnp.concatenate(b_eff)[None, :].astype(f32),            # (1, 3E)
        "wo": p["out_proj_w"].T.astype(compute_dtype),                   # (E, E)
        "bo": p["out_proj_b"].astype(f32),                               # (1, E)
        "w3": lw[3].T.astype(compute_dtype),                             # (E, E)
        "b3": lb[3][None, :].astype(f32),                                # (1, E)
        "n1w": p["n1_w"].astype(f32), "n1b": p["n1_b"].astype(f32),
        "n2w": p["n2_w"].astype(f32), "n2b": p["n2_b"].astype(f32),
        "w1": p["ff1_w"].T.astype(compute_dtype),                        # (E, F)
        "b1": p["ff1_b"].astype(f32),                                    # (1, F)
        "w2": p["ff2_w"].T.astype(compute_dtype),                        # (F, E)
        "b2": p["ff2_b"].astype(f32),                                    # (1, E)
    }


def _pick_block_batch(N, L, target_rows=256):
    """Largest divisor of N whose B_tile*L row count stays within the MXU target."""
    best = 1
    for d in range(1, N + 1):
        if N % d == 0 and d * L <= max(target_rows, L):
            best = d
    return best


def encoder_layer(x, params, num_heads, *, block_batch=None,
                  compute_dtype=jnp.bfloat16):
    """x: (L, N, E) like the PyTorch module (batch_first=False). Returns (L, N, E)."""
    L, N, E = x.shape
    Fd = params["ff1_w"].shape[0]
    w = _prepare_weights(params, num_heads, E, compute_dtype)

    B_tile = _pick_block_batch(N, L) if block_batch is None else block_batch
    assert N % B_tile == 0, "block_batch must divide the batch size"
    grid = (N // B_tile,)

    xb = jnp.transpose(x, (1, 0, 2))                     # (N, L, E)

    kernel = functools.partial(encoder_layer_kernel, num_heads=num_heads)
    const2d = lambda i: (0, 0)                           # weights: resident, fetched once

    out = pl.pallas_call(
        kernel,
        out_shape=jax.ShapeDtypeStruct((N, L, E), x.dtype),
        grid=grid,
        in_specs=[
            pl.BlockSpec((B_tile, L, E), lambda i: (i, 0, 0)),   # x slab
            pl.BlockSpec((E, 3 * E), const2d),                   # w_qkv
            pl.BlockSpec((1, 3 * E), const2d),                   # b_qkv
            pl.BlockSpec((E, E), const2d),                       # wo
            pl.BlockSpec((1, E), const2d),                       # bo
            pl.BlockSpec((E, E), const2d),                       # w3
            pl.BlockSpec((1, E), const2d),                       # b3
            pl.BlockSpec((1, E), const2d),                       # n1w
            pl.BlockSpec((1, E), const2d),                       # n1b
            pl.BlockSpec((1, E), const2d),                       # n2w
            pl.BlockSpec((1, E), const2d),                       # n2b
            pl.BlockSpec((E, Fd), const2d),                      # w1
            pl.BlockSpec((1, Fd), const2d),                      # b1
            pl.BlockSpec((Fd, E), const2d),                      # w2
            pl.BlockSpec((1, E), const2d),                       # b2
        ],
        out_specs=pl.BlockSpec((B_tile, L, E), lambda i: (i, 0, 0)),
        compiler_params=pltpu.CompilerParams(
            dimension_semantics=("parallel",),
            vmem_limit_bytes=32 * 1024 * 1024,
        ),
    )(
        xb,
        w["w_qkv"], w["b_qkv"],
        w["wo"], w["bo"],
        w["w3"], w["b3"],
        w["n1w"], w["n1b"],
        w["n2w"], w["n2b"],
        w["w1"], w["b1"],
        w["w2"], w["b2"],
    )
    return jnp.transpose(out, (1, 0, 2))                 # back to (L, N, E)


def encoder_layer_ref(x, p, num_heads):
    """Pure-JAX f32 reference mirroring the PyTorch forward (eval mode)."""
    L, N, E = x.shape
    H = num_heads
    hd = E // H

    def ln(v, w, b, eps=1e-5):
        mu = v.mean(-1, keepdims=True)
        var = ((v - mu) ** 2).mean(-1, keepdims=True)
        return (v - mu) / jnp.sqrt(var + eps) * w + b

    def lin(v, w, b):
        return v @ w.T + b

    x1 = ln(x, p["n1_w"][0], p["n1_b"][0])
    q_in = lin(x1, p["lin_w"][0], p["lin_b"][0])
    k_in = lin(x1, p["lin_w"][1], p["lin_b"][1])
    v_in = lin(x1, p["lin_w"][2], p["lin_b"][2])
    ipw, ipb = p["in_proj_w"], p["in_proj_b"][0]
    q = lin(q_in, ipw[:E], ipb[:E])
    k = lin(k_in, ipw[E:2 * E], ipb[E:2 * E])
    v = lin(v_in, ipw[2 * E:], ipb[2 * E:])

    def heads(t):
        return t.reshape(L, N, H, hd).transpose(1, 2, 0, 3)   # (N, H, L, hd)

    qh, kh, vh = heads(q), heads(k), heads(v)
    s = jnp.einsum("nhld,nhmd->nhlm", qh, kh) / jnp.sqrt(jnp.float32(hd))
    pw = jax.nn.softmax(s, axis=-1)
    a = jnp.einsum("nhlm,nhmd->nhld", pw, vh).transpose(2, 0, 1, 3).reshape(L, N, E)
    a = lin(a, p["out_proj_w"], p["out_proj_b"][0])
    y = a + lin(a, p["lin_w"][3], p["lin_b"][3])
    z = ln(y, p["n2_w"][0], p["n2_b"][0])
    ff = jnp.maximum(lin(z, p["ff1_w"], p["ff1_b"][0]), 0.0)
    ff = lin(ff, p["ff2_w"], p["ff2_b"][0])
    return z + ff


def make_params(key, E, H, F):
    ks = jax.random.split(key, 12)
    s = 0.02
    return {
        "lin_w": jax.random.normal(ks[0], (4, E, E), jnp.float32) * s,
        "lin_b": jax.random.normal(ks[1], (4, E), jnp.float32) * s,
        "in_proj_w": jax.random.normal(ks[2], (3 * E, E), jnp.float32) * s,
        "in_proj_b": jax.random.normal(ks[3], (1, 3 * E), jnp.float32) * s,
        "out_proj_w": jax.random.normal(ks[4], (E, E), jnp.float32) * s,
        "out_proj_b": jax.random.normal(ks[5], (1, E), jnp.float32) * s,
        "n1_w": jnp.ones((1, E), jnp.float32),
        "n1_b": jnp.zeros((1, E), jnp.float32),
        "n2_w": jnp.ones((1, E), jnp.float32),
        "n2_b": jnp.zeros((1, E), jnp.float32),
        "ff1_w": jax.random.normal(ks[6], (F, E), jnp.float32) * s,
        "ff1_b": jax.random.normal(ks[7], (1, F), jnp.float32) * s,
        "ff2_w": jax.random.normal(ks[8], (E, F), jnp.float32) * s,
        "ff2_b": jax.random.normal(ks[9], (1, E), jnp.float32) * s,
    }


if __name__ == "__main__":
    # small shapes: seq=8, batch=2, embed=32, heads=4, ff=64
    L, N, E, H, Fd = 8, 2, 32, 4, 64

    key = jax.random.PRNGKey(0)
    kx, kp = jax.random.split(key)
    x = jax.random.normal(kx, (L, N, E), jnp.float32)   # (seq, batch, embed)
    params = make_params(kp, E, H, Fd)

    out = encoder_layer(x, params, num_heads=H)
    out = jax.block_until_ready(out)

    ref = encoder_layer_ref(x, params, num_heads=H)
    assert out.shape == (L, N, E)
    # bf16 MXU operands + approx softmax reciprocal vs. an all-f32 reference:
    # keep a correspondingly looser (but still tight) tolerance.
    assert jnp.allclose(out, ref, rtol=2e-2, atol=2e-2), "mismatch vs JAX reference"

    print("KERNEL_OK")
</pallas_src>

<mosaic_0001>
module attributes {stable_mosaic.version = 11 : i64} {
  func.func @encoder_layer_kernel(%arg0: i32, %arg1: memref<2x8x32xf32, #tpu.memory_space<vmem>>, %arg2: memref<32x96xbf16, #tpu.memory_space<vmem>>, %arg3: memref<1x96xf32, #tpu.memory_space<vmem>>, %arg4: memref<32x32xbf16, #tpu.memory_space<vmem>>, %arg5: memref<1x32xf32, #tpu.memory_space<vmem>>, %arg6: memref<32x32xbf16, #tpu.memory_space<vmem>>, %arg7: memref<1x32xf32, #tpu.memory_space<vmem>>, %arg8: memref<1x32xf32, #tpu.memory_space<vmem>>, %arg9: memref<1x32xf32, #tpu.memory_space<vmem>>, %arg10: memref<1x32xf32, #tpu.memory_space<vmem>>, %arg11: memref<1x32xf32, #tpu.memory_space<vmem>>, %arg12: memref<32x64xbf16, #tpu.memory_space<vmem>>, %arg13: memref<1x64xf32, #tpu.memory_space<vmem>>, %arg14: memref<64x32xbf16, #tpu.memory_space<vmem>>, %arg15: memref<1x32xf32, #tpu.memory_space<vmem>>, %arg16: memref<2x8x32xf32, #tpu.memory_space<vmem>>) attributes {dimension_semantics = [#tpu.dimension_semantics<parallel>], iteration_bounds = array<i64: 1>, scalar_prefetch = 0 : i64, scratch_operands = 0 : i64, tpu.core_type = #tpu.core_type<tc>, window_params = [{transform_indices = @transform_0, window_bounds = array<i64: 2, 8, 32>}, {pipeline_mode = #tpu.pipeline_mode<synchronous>, transform_indices = @transform_1, window_bounds = array<i64: 32, 96>}, {pipeline_mode = #tpu.pipeline_mode<synchronous>, transform_indices = @transform_2, window_bounds = array<i64: 1, 96>}, {pipeline_mode = #tpu.pipeline_mode<synchronous>, transform_indices = @transform_3, window_bounds = array<i64: 32, 32>}, {pipeline_mode = #tpu.pipeline_mode<synchronous>, transform_indices = @transform_4, window_bounds = array<i64: 1, 32>}, {pipeline_mode = #tpu.pipeline_mode<synchronous>, transform_indices = @transform_5, window_bounds = array<i64: 32, 32>}, {pipeline_mode = #tpu.pipeline_mode<synchronous>, transform_indices = @transform_6, window_bounds = array<i64: 1, 32>}, {pipeline_mode = #tpu.pipeline_mode<synchronous>, transform_indices = @transform_7, window_bounds = array<i64: 1, 32>}, {pipeline_mode = #tpu.pipeline_mode<synchronous>, transform_indices = @transform_8, window_bounds = array<i64: 1, 32>}, {pipeline_mode = #tpu.pipeline_mode<synchronous>, transform_indices = @transform_9, window_bounds = array<i64: 1, 32>}, {pipeline_mode = #tpu.pipeline_mode<synchronous>, transform_indices = @transform_10, window_bounds = array<i64: 1, 32>}, {pipeline_mode = #tpu.pipeline_mode<synchronous>, transform_indices = @transform_11, window_bounds = array<i64: 32, 64>}, {pipeline_mode = #tpu.pipeline_mode<synchronous>, transform_indices = @transform_12, window_bounds = array<i64: 1, 64>}, {pipeline_mode = #tpu.pipeline_mode<synchronous>, transform_indices = @transform_13, window_bounds = array<i64: 64, 32>}, {pipeline_mode = #tpu.pipeline_mode<synchronous>, transform_indices = @transform_14, window_bounds = array<i64: 1, 32>}, {transform_indices = @transform_15, window_bounds = array<i64: 2, 8, 32>}]} {
    %c0 = arith.constant 0 : index
    %c0_0 = arith.constant 0 : index
    %c0_1 = arith.constant 0 : index
    %0 = vector.load %arg1[%c0, %c0_0, %c0_1] : memref<2x8x32xf32, #tpu.memory_space<vmem>>, vector<2x8x32xf32>
    %1 = vector.shape_cast %0 : vector<2x8x32xf32> to vector<16x32xf32>
    %c0_2 = arith.constant 0 : index
    %c0_3 = arith.constant 0 : index
    %2 = vector.load %arg8[%c0_2, %c0_3] : memref<1x32xf32, #tpu.memory_space<vmem>>, vector<1x32xf32>
    %c0_4 = arith.constant 0 : index
    %c0_5 = arith.constant 0 : index
    %3 = vector.load %arg9[%c0_4, %c0_5] : memref<1x32xf32, #tpu.memory_space<vmem>>, vector<1x32xf32>
    %cst = arith.constant dense<0.000000e+00> : vector<16xf32>
    %4 = vector.multi_reduction <add>, %1, %cst [1] : vector<16x32xf32> to vector<16xf32>
    %5 = vector.shape_cast %4 : vector<16xf32> to vector<16x1xf32>
    %cst_6 = arith.constant 3.200000e+01 : f32
    %6 = vector.broadcast %cst_6 : f32 to vector<16x1xf32>
    %7 = arith.divf %5, %6 : vector<16x1xf32>
    %8 = vector.broadcast %7 : vector<16x1xf32> to vector<16x32xf32>
    %9 = arith.subf %1, %8 : vector<16x32xf32>
    %10 = arith.mulf %9, %9 : vector<16x32xf32>
    %cst_7 = arith.constant dense<0.000000e+00> : vector<16xf32>
    %11 = vector.multi_reduction <add>, %10, %cst_7 [1] : vector<16x32xf32> to vector<16xf32>
    %12 = vector.shape_cast %11 : vector<16xf32> to vector<16x1xf32>
    %cst_8 = arith.constant 3.200000e+01 : f32
    %13 = vector.broadcast %cst_8 : f32 to vector<16x1xf32>
    %14 = arith.divf %12, %13 : vector<16x1xf32>
    %15 = vector.broadcast %7 : vector<16x1xf32> to vector<16x32xf32>
    %16 = arith.subf %1, %15 : vector<16x32xf32>
    %cst_9 = arith.constant 9.99999974E-6 : f32
    %17 = vector.broadcast %cst_9 : f32 to vector<16x1xf32>
    %18 = arith.addf %14, %17 : vector<16x1xf32>
    %19 = math.rsqrt %18 : vector<16x1xf32>
    %20 = vector.broadcast %19 : vector<16x1xf32> to vector<16x32xf32>
    %21 = arith.mulf %16, %20 : vector<16x32xf32>
    %22 = vector.broadcast %2 : vector<1x32xf32> to vector<16x32xf32>
    %23 = arith.mulf %21, %22 : vector<16x32xf32>
    %24 = vector.broadcast %3 : vector<1x32xf32> to vector<16x32xf32>
    %25 = arith.addf %23, %24 : vector<16x32xf32>
    %26 = arith.truncf %25 : vector<16x32xf32> to vector<16x32xbf16>
    %c0_10 = arith.constant 0 : index
    %c0_11 = arith.constant 0 : index
    %27 = vector.load %arg2[%c0_10, %c0_11] : memref<32x96xbf16, #tpu.memory_space<vmem>>, vector<32x96xbf16>
    %cst_12 = arith.constant dense<0.000000e+00> : vector<16x96xf32>
    %28 = tpu.matmul %26, %27, %cst_12 {dimension_numbers = #tpu.dot_dimension_numbers<[1], [0], [0], [1], [0, 0, 1, 1], [], []>} : vector<16x32xbf16>, vector<32x96xbf16>, vector<16x96xf32> -> vector<16x96xf32>
    %c0_13 = arith.constant 0 : index
    %c0_14 = arith.constant 0 : index
    %29 = vector.load %arg3[%c0_13, %c0_14] : memref<1x96xf32, #tpu.memory_space<vmem>>, vector<1x96xf32>
    %30 = vector.broadcast %29 : vector<1x96xf32> to vector<16x96xf32>
    %31 = arith.addf %28, %30 : vector<16x96xf32>
    %32 = vector.extract_strided_slice %31 {offsets = [0, 0], sizes = [16, 32], strides = [1, 1]} : vector<16x96xf32> to vector<16x32xf32>
    %33 = arith.truncf %32 : vector<16x32xf32> to vector<16x32xbf16>
    %34 = vector.shape_cast %33 : vector<16x32xbf16> to vector<2x8x32xbf16>
    %35 = vector.extract_strided_slice %31 {offsets = [0, 32], sizes = [16, 32], strides = [1, 1]} : vector<16x96xf32> to vector<16x32xf32>
    %36 = arith.truncf %35 : vector<16x32xf32> to vector<16x32xbf16>
    %37 = vector.shape_cast %36 : vector<16x32xbf16> to vector<2x8x32xbf16>
    %38 = vector.extract_strided_slice %31 {offsets = [0, 64], sizes = [16, 32], strides = [1, 1]} : vector<16x96xf32> to vector<16x32xf32>
    %39 = arith.truncf %38 : vector<16x32xf32> to vector<16x32xbf16>
    %40 = vector.shape_cast %39 : vector<16x32xbf16> to vector<2x8x32xbf16>
    %41 = vector.extract_strided_slice %34 {offsets = [0, 0, 0], sizes = [2, 8, 8], strides = [1, 1, 1]} : vector<2x8x32xbf16> to vector<2x8x8xbf16>
    %42 = vector.extract_strided_slice %37 {offsets = [0, 0, 0], sizes = [2, 8, 8], strides = [1, 1, 1]} : vector<2x8x32xbf16> to vector<2x8x8xbf16>
    %43 = vector.extract_strided_slice %40 {offsets = [0, 0, 0], sizes = [2, 8, 8], strides = [1, 1, 1]} : vector<2x8x32xbf16> to vector<2x8x8xbf16>
    "tpu.trace_start"() <{level = 10 : i32, message = "bld,bmd->blm"}> : () -> ()
    %cst_15 = arith.constant dense<0.000000e+00> : vector<2x8x8xf32>
    %44 = tpu.matmul %41, %42, %cst_15 {dimension_numbers = #tpu.dot_dimension_numbers<[2], [2], [1], [1], [0, 0, 0, 1, 1, 1], [0], [0]>} : vector<2x8x8xbf16>, vector<2x8x8xbf16>, vector<2x8x8xf32> -> vector<2x8x8xf32>
    "tpu.trace_stop"() : () -> ()
    %cst_16 = arith.constant dense<0xFF800000> : vector<2x8xf32>
    %45 = vector.multi_reduction <maximumf>, %44, %cst_16 [2] : vector<2x8x8xf32> to vector<2x8xf32>
    %46 = vector.shape_cast %45 : vector<2x8xf32> to vector<2x8x1xf32>
    %47 = vector.broadcast %46 : vector<2x8x1xf32> to vector<2x8x8xf32>
    %48 = arith.subf %44, %47 : vector<2x8x8xf32>
    %49 = math.exp %48 : vector<2x8x8xf32>
    %cst_17 = arith.constant dense<0.000000e+00> : vector<2x8xf32>
    %50 = vector.multi_reduction <add>, %49, %cst_17 [2] : vector<2x8x8xf32> to vector<2x8xf32>
    %51 = vector.shape_cast %50 : vector<2x8xf32> to vector<2x8x1xf32>
    %52 = tpu.reciprocal %51 {approx = true} : vector<2x8x1xf32> -> vector<2x8x1xf32>
    %53 = vector.broadcast %52 : vector<2x8x1xf32> to vector<2x8x8xf32>
    %54 = arith.mulf %49, %53 : vector<2x8x8xf32>
    %55 = arith.truncf %54 : vector<2x8x8xf32> to vector<2x8x8xbf16>
    "tpu.trace_start"() <{level = 10 : i32, message = "blm,bmd->bld"}> : () -> ()
    %cst_18 = arith.constant dense<0.000000e+00> : vector<2x8x8xf32>
    %56 = tpu.matmul %55, %43, %cst_18 {dimension_numbers = #tpu.dot_dimension_numbers<[2], [1], [1], [2], [0, 0, 0, 1, 1, 2], [0], [0]>} : vector<2x8x8xbf16>, vector<2x8x8xbf16>, vector<2x8x8xf32> -> vector<2x8x8xf32>
    "tpu.trace_stop"() : () -> ()
    %57 = vector.shape_cast %56 : vector<2x8x8xf32> to vector<16x8xf32>
    %58 = vector.extract_strided_slice %34 {offsets = [0, 0, 8], sizes = [2, 8, 8], strides = [1, 1, 1]} : vector<2x8x32xbf16> to vector<2x8x8xbf16>
    %59 = vector.extract_strided_slice %37 {offsets = [0, 0, 8], sizes = [2, 8, 8], strides = [1, 1, 1]} : vector<2x8x32xbf16> to vector<2x8x8xbf16>
    %60 = vector.extract_strided_slice %40 {offsets = [0, 0, 8], sizes = [2, 8, 8], strides = [1, 1, 1]} : vector<2x8x32xbf16> to vector<2x8x8xbf16>
    "tpu.trace_start"() <{level = 10 : i32, message = "bld,bmd->blm"}> : () -> ()
    %cst_19 = arith.constant dense<0.000000e+00> : vector<2x8x8xf32>
    %61 = tpu.matmul %58, %59, %cst_19 {dimension_numbers = #tpu.dot_dimension_numbers<[2], [2], [1], [1], [0, 0, 0, 1, 1, 1], [0], [0]>} : vector<2x8x8xbf16>, vector<2x8x8xbf16>, vector<2x8x8xf32> -> vector<2x8x8xf32>
    "tpu.trace_stop"() : () -> ()
    %cst_20 = arith.constant dense<0xFF800000> : vector<2x8xf32>
    %62 = vector.multi_reduction <maximumf>, %61, %cst_20 [2] : vector<2x8x8xf32> to vector<2x8xf32>
    %63 = vector.shape_cast %62 : vector<2x8xf32> to vector<2x8x1xf32>
    %64 = vector.broadcast %63 : vector<2x8x1xf32> to vector<2x8x8xf32>
    %65 = arith.subf %61, %64 : vector<2x8x8xf32>
    %66 = math.exp %65 : vector<2x8x8xf32>
    %cst_21 = arith.constant dense<0.000000e+00> : vector<2x8xf32>
    %67 = vector.multi_reduction <add>, %66, %cst_21 [2] : vector<2x8x8xf32> to vector<2x8xf32>
    %68 = vector.shape_cast %67 : vector<2x8xf32> to vector<2x8x1xf32>
    %69 = tpu.reciprocal %68 {approx = true} : vector<2x8x1xf32> -> vector<2x8x1xf32>
    %70 = vector.broadcast %69 : vector<2x8x1xf32> to vector<2x8x8xf32>
    %71 = arith.mulf %66, %70 : vector<2x8x8xf32>
    %72 = arith.truncf %71 : vector<2x8x8xf32> to vector<2x8x8xbf16>
    "tpu.trace_start"() <{level = 10 : i32, message = "blm,bmd->bld"}> : () -> ()
    %cst_22 = arith.constant dense<0.000000e+00> : vector<2x8x8xf32>
    %73 = tpu.matmul %72, %60, %cst_22 {dimension_numbers = #tpu.dot_dimension_numbers<[2], [1], [1], [2], [0, 0, 0, 1, 1, 2], [0], [0]>} : vector<2x8x8xbf16>, vector<2x8x8xbf16>, vector<2x8x8xf32> -> vector<2x8x8xf32>
    "tpu.trace_stop"() : () -> ()
    %74 = vector.shape_cast %73 : vector<2x8x8xf32> to vector<16x8xf32>
    %75 = vector.extract_strided_slice %34 {offsets = [0, 0, 16], sizes = [2, 8, 8], strides = [1, 1, 1]} : vector<2x8x32xbf16> to vector<2x8x8xbf16>
    %76 = vector.extract_strided_slice %37 {offsets = [0, 0, 16], sizes = [2, 8, 8], strides = [1, 1, 1]} : vector<2x8x32xbf16> to vector<2x8x8xbf16>
    %77 = vector.extract_strided_slice %40 {offsets = [0, 0, 16], sizes = [2, 8, 8], strides = [1, 1, 1]} : vector<2x8x32xbf16> to vector<2x8x8xbf16>
    "tpu.trace_start"() <{level = 10 : i32, message = "bld,bmd->blm"}> : () -> ()
    %cst_23 = arith.constant dense<0.000000e+00> : vector<2x8x8xf32>
    %78 = tpu.matmul %75, %76, %cst_23 {dimension_numbers = #tpu.dot_dimension_numbers<[2], [2], [1], [1], [0, 0, 0, 1, 1, 1], [0], [0]>} : vector<2x8x8xbf16>, vector<2x8x8xbf16>, vector<2x8x8xf32> -> vector<2x8x8xf32>
    "tpu.trace_stop"() : () -> ()
    %cst_24 = arith.constant dense<0xFF800000> : vector<2x8xf32>
    %79 = vector.multi_reduction <maximumf>, %78, %cst_24 [2] : vector<2x8x8xf32> to vector<2x8xf32>
    %80 = vector.shape_cast %79 : vector<2x8xf32> to vector<2x8x1xf32>
    %81 = vector.broadcast %80 : vector<2x8x1xf32> to vector<2x8x8xf32>
    %82 = arith.subf %78, %81 : vector<2x8x8xf32>
    %83 = math.exp %82 : vector<2x8x8xf32>
    %cst_25 = arith.constant dense<0.000000e+00> : vector<2x8xf32>
    %84 = vector.multi_reduction <add>, %83, %cst_25 [2] : vector<2x8x8xf32> to vector<2x8xf32>
    %85 = vector.shape_cast %84 : vector<2x8xf32> to vector<2x8x1xf32>
    %86 = tpu.reciprocal %85 {approx = true} : vector<2x8x1xf32> -> vector<2x8x1xf32>
    %87 = vector.broadcast %86 : vector<2x8x1xf32> to vector<2x8x8xf32>
    %88 = arith.mulf %83, %87 : vector<2x8x8xf32>
    %89 = arith.truncf %88 : vector<2x8x8xf32> to vector<2x8x8xbf16>
    "tpu.trace_start"() <{level = 10 : i32, message = "blm,bmd->bld"}> : () -> ()
    %cst_26 = arith.constant dense<0.000000e+00> : vector<2x8x8xf32>
    %90 = tpu.matmul %89, %77, %cst_26 {dimension_numbers = #tpu.dot_dimension_numbers<[2], [1], [1], [2], [0, 0, 0, 1, 1, 2], [0], [0]>} : vector<2x8x8xbf16>, vector<2x8x8xbf16>, vector<2x8x8xf32> -> vector<2x8x8xf32>
    "tpu.trace_stop"() : () -> ()
    %91 = vector.shape_cast %90 : vector<2x8x8xf32> to vector<16x8xf32>
    %92 = vector.extract_strided_slice %34 {offsets = [0, 0, 24], sizes = [2, 8, 8], strides = [1, 1, 1]} : vector<2x8x32xbf16> to vector<2x8x8xbf16>
    %93 = vector.extract_strided_slice %37 {offsets = [0, 0, 24], sizes = [2, 8, 8], strides = [1, 1, 1]} : vector<2x8x32xbf16> to vector<2x8x8xbf16>
    %94 = vector.extract_strided_slice %40 {offsets = [0, 0, 24], sizes = [2, 8, 8], strides = [1, 1, 1]} : vector<2x8x32xbf16> to vector<2x8x8xbf16>
    "tpu.trace_start"() <{level = 10 : i32, message = "bld,bmd->blm"}> : () -> ()
    %cst_27 = arith.constant dense<0.000000e+00> : vector<2x8x8xf32>
    %95 = tpu.matmul %92, %93, %cst_27 {dimension_numbers = #tpu.dot_dimension_numbers<[2], [2], [1], [1], [0, 0, 0, 1, 1, 1], [0], [0]>} : vector<2x8x8xbf16>, vector<2x8x8xbf16>, vector<2x8x8xf32> -> vector<2x8x8xf32>
    "tpu.trace_stop"() : () -> ()
    %cst_28 = arith.constant dense<0xFF800000> : vector<2x8xf32>
    %96 = vector.multi_reduction <maximumf>, %95, %cst_28 [2] : vector<2x8x8xf32> to vector<2x8xf32>
    %97 = vector.shape_cast %96 : vector<2x8xf32> to vector<2x8x1xf32>
    %98 = vector.broadcast %97 : vector<2x8x1xf32> to vector<2x8x8xf32>
    %99 = arith.subf %95, %98 : vector<2x8x8xf32>
    %100 = math.exp %99 : vector<2x8x8xf32>
    %cst_29 = arith.constant dense<0.000000e+00> : vector<2x8xf32>
    %101 = vector.multi_reduction <add>, %100, %cst_29 [2] : vector<2x8x8xf32> to vector<2x8xf32>
    %102 = vector.shape_cast %101 : vector<2x8xf32> to vector<2x8x1xf32>
    %103 = tpu.reciprocal %102 {approx = true} : vector<2x8x1xf32> -> vector<2x8x1xf32>
    %104 = vector.broadcast %103 : vector<2x8x1xf32> to vector<2x8x8xf32>
    %105 = arith.mulf %100, %104 : vector<2x8x8xf32>
    %106 = arith.truncf %105 : vector<2x8x8xf32> to vector<2x8x8xbf16>
    "tpu.trace_start"() <{level = 10 : i32, message = "blm,bmd->bld"}> : () -> ()
    %cst_30 = arith.constant dense<0.000000e+00> : vector<2x8x8xf32>
    %107 = tpu.matmul %106, %94, %cst_30 {dimension_numbers = #tpu.dot_dimension_numbers<[2], [1], [1], [2], [0, 0, 0, 1, 1, 2], [0], [0]>} : vector<2x8x8xbf16>, vector<2x8x8xbf16>, vector<2x8x8xf32> -> vector<2x8x8xf32>
    "tpu.trace_stop"() : () -> ()
    %108 = vector.shape_cast %107 : vector<2x8x8xf32> to vector<16x8xf32>
    %109 = tpu.concatenate %57, %74, %91, %108 in 1 : vector<16x8xf32>, vector<16x8xf32>, vector<16x8xf32>, vector<16x8xf32> -> vector<16x32xf32>
    %110 = arith.truncf %109 : vector<16x32xf32> to vector<16x32xbf16>
    %c0_31 = arith.constant 0 : index
    %c0_32 = arith.constant 0 : index
    %111 = vector.load %arg4[%c0_31, %c0_32] : memref<32x32xbf16, #tpu.memory_space<vmem>>, vector<32x32xbf16>
    %cst_33 = arith.constant dense<0.000000e+00> : vector<16x32xf32>
    %112 = tpu.matmul %110, %111, %cst_33 {dimension_numbers = #tpu.dot_dimension_numbers<[1], [0], [0], [1], [0, 0, 1, 1], [], []>} : vector<16x32xbf16>, vector<32x32xbf16>, vector<16x32xf32> -> vector<16x32xf32>
    %c0_34 = arith.constant 0 : index
    %c0_35 = arith.constant 0 : index
    %113 = vector.load %arg5[%c0_34, %c0_35] : memref<1x32xf32, #tpu.memory_space<vmem>>, vector<1x32xf32>
    %114 = vector.broadcast %113 : vector<1x32xf32> to vector<16x32xf32>
    %115 = arith.addf %112, %114 : vector<16x32xf32>
    %116 = arith.truncf %115 : vector<16x32xf32> to vector<16x32xbf16>
    %c0_36 = arith.constant 0 : index
    %c0_37 = arith.constant 0 : index
    %117 = vector.load %arg6[%c0_36, %c0_37] : memref<32x32xbf16, #tpu.memory_space<vmem>>, vector<32x32xbf16>
    %cst_38 = arith.constant dense<0.000000e+00> : vector<16x32xf32>
    %118 = tpu.matmul %116, %117, %cst_38 {dimension_numbers = #tpu.dot_dimension_numbers<[1], [0], [0], [1], [0, 0, 1, 1], [], []>} : vector<16x32xbf16>, vector<32x32xbf16>, vector<16x32xf32> -> vector<16x32xf32>
    %c0_39 = arith.constant 0 : index
    %c0_40 = arith.constant 0 : index
    %119 = vector.load %arg7[%c0_39, %c0_40] : memref<1x32xf32, #tpu.memory_space<vmem>>, vector<1x32xf32>
    %120 = vector.broadcast %119 : vector<1x32xf32> to vector<16x32xf32>
    %121 = arith.addf %118, %120 : vector<16x32xf32>
    %122 = arith.addf %115, %121 : vector<16x32xf32>
    %c0_41 = arith.constant 0 : index
    %c0_42 = arith.constant 0 : index
    %123 = vector.load %arg10[%c0_41, %c0_42] : memref<1x32xf32, #tpu.memory_space<vmem>>, vector<1x32xf32>
    %c0_43 = arith.constant 0 : index
    %c0_44 = arith.constant 0 : index
    %124 = vector.load %arg11[%c0_43, %c0_44] : memref<1x32xf32, #tpu.memory_space<vmem>>, vector<1x32xf32>
    %cst_45 = arith.constant dense<0.000000e+00> : vector<16xf32>
    %125 = vector.multi_reduction <add>, %122, %cst_45 [1] : vector<16x32xf32> to vector<16xf32>
    %126 = vector.shape_cast %125 : vector<16xf32> to vector<16x1xf32>
    %cst_46 = arith.constant 3.200000e+01 : f32
    %127 = vector.broadcast %cst_46 : f32 to vector<16x1xf32>
    %128 = arith.divf %126, %127 : vector<16x1xf32>
    %129 = vector.broadcast %128 : vector<16x1xf32> to vector<16x32xf32>
    %130 = arith.subf %122, %129 : vector<16x32xf32>
    %131 = arith.mulf %130, %130 : vector<16x32xf32>
    %cst_47 = arith.constant dense<0.000000e+00> : vector<16xf32>
    %132 = vector.multi_reduction <add>, %131, %cst_47 [1] : vector<16x32xf32> to vector<16xf32>
    %133 = vector.shape_cast %132 : vector<16xf32> to vector<16x1xf32>
    %cst_48 = arith.constant 3.200000e+01 : f32
    %134 = vector.broadcast %cst_48 : f32 to vector<16x1xf32>
    %135 = arith.divf %133, %134 : vector<16x1xf32>
    %136 = vector.broadcast %128 : vector<16x1xf32> to vector<16x32xf32>
    %137 = arith.subf %122, %136 : vector<16x32xf32>
    %cst_49 = arith.constant 9.99999974E-6 : f32
    %138 = vector.broadcast %cst_49 : f32 to vector<16x1xf32>
    %139 = arith.addf %135, %138 : vector<16x1xf32>
    %140 = math.rsqrt %139 : vector<16x1xf32>
    %141 = vector.broadcast %140 : vector<16x1xf32> to vector<16x32xf32>
    %142 = arith.mulf %137, %141 : vector<16x32xf32>
    %143 = vector.broadcast %123 : vector<1x32xf32> to vector<16x32xf32>
    %144 = arith.mulf %142, %143 : vector<16x32xf32>
    %145 = vector.broadcast %124 : vector<1x32xf32> to vector<16x32xf32>
    %146 = arith.addf %144, %145 : vector<16x32xf32>
    %147 = arith.truncf %146 : vector<16x32xf32> to vector<16x32xbf16>
    %c0_50 = arith.constant 0 : index
    %c0_51 = arith.constant 0 : index
    %148 = vector.load %arg12[%c0_50, %c0_51] : memref<32x64xbf16, #tpu.memory_space<vmem>>, vector<32x64xbf16>
    %cst_52 = arith.constant dense<0.000000e+00> : vector<16x64xf32>
    %149 = tpu.matmul %147, %148, %cst_52 {dimension_numbers = #tpu.dot_dimension_numbers<[1], [0], [0], [1], [0, 0, 1, 1], [], []>} : vector<16x32xbf16>, vector<32x64xbf16>, vector<16x64xf32> -> vector<16x64xf32>
    %c0_53 = arith.constant 0 : index
    %c0_54 = arith.constant 0 : index
    %150 = vector.load %arg13[%c0_53, %c0_54] : memref<1x64xf32, #tpu.memory_space<vmem>>, vector<1x64xf32>
    %151 = vector.broadcast %150 : vector<1x64xf32> to vector<16x64xf32>
    %152 = arith.addf %149, %151 : vector<16x64xf32>
    %cst_55 = arith.constant 0.000000e+00 : f32
    %153 = vector.broadcast %cst_55 : f32 to vector<16x64xf32>
    %154 = arith.maximumf %152, %153 : vector<16x64xf32>
    %155 = arith.truncf %154 : vector<16x64xf32> to vector<16x64xbf16>
    %c0_56 = arith.constant 0 : index
    %c0_57 = arith.constant 0 : index
    %156 = vector.load %arg14[%c0_56, %c0_57] : memref<64x32xbf16, #tpu.memory_space<vmem>>, vector<64x32xbf16>
    %cst_58 = arith.constant dense<0.000000e+00> : vector<16x32xf32>
    %157 = tpu.matmul %155, %156, %cst_58 {dimension_numbers = #tpu.dot_dimension_numbers<[1], [0], [0], [1], [0, 0, 1, 1], [], []>} : vector<16x64xbf16>, vector<64x32xbf16>, vector<16x32xf32> -> vector<16x32xf32>
    %c0_59 = arith.constant 0 : index
    %c0_60 = arith.constant 0 : index
    %158 = vector.load %arg15[%c0_59, %c0_60] : memref<1x32xf32, #tpu.memory_space<vmem>>, vector<1x32xf32>
    %159 = vector.broadcast %158 : vector<1x32xf32> to vector<16x32xf32>
    %160 = arith.addf %157, %159 : vector<16x32xf32>
    %161 = arith.addf %146, %160 : vector<16x32xf32>
    %162 = vector.shape_cast %161 : vector<16x32xf32> to vector<2x8x32xf32>
    %c0_61 = arith.constant 0 : index
    %c0_62 = arith.constant 0 : index
    %c0_63 = arith.constant 0 : index
    %163 = vector.load %arg16[%c0_61, %c0_62, %c0_63] : memref<2x8x32xf32, #tpu.memory_space<vmem>>, vector<2x8x32xf32>
    tpu.vector_store %arg16[%c0_61, %c0_62, %c0_63], %162 {strides = array<i32>} : memref<2x8x32xf32, #tpu.memory_space<vmem>>, vector<2x8x32xf32>,
    return
  }
  func.func @transform_0(%arg0: i32) -> (i32, i32, i32) {
    %c0_i32 = arith.constant 0 : i32
    %c0_i32_0 = arith.constant 0 : i32
    %c0_i32_1 = arith.constant 0 : i32
    return %arg0, %c0_i32, %c0_i32_0 : i32, i32, i32
  }
  func.func @transform_1(%arg0: i32) -> (i32, i32) {
    %c0_i32 = arith.constant 0 : i32
    %c0_i32_0 = arith.constant 0 : i32
    %c0_i32_1 = arith.constant 0 : i32
    return %c0_i32, %c0_i32_0 : i32, i32
  }
  func.func @transform_2(%arg0: i32) -> (i32, i32) {
    %c0_i32 = arith.constant 0 : i32
    %c0_i32_0 = arith.constant 0 : i32
    %c0_i32_1 = arith.constant 0 : i32
    return %c0_i32, %c0_i32_0 : i32, i32
  }
  func.func @transform_3(%arg0: i32) -> (i32, i32) {
    %c0_i32 = arith.constant 0 : i32
    %c0_i32_0 = arith.constant 0 : i32
    %c0_i32_1 = arith.constant 0 : i32
    return %c0_i32, %c0_i32_0 : i32, i32
  }
  func.func @transform_4(%arg0: i32) -> (i32, i32) {
    %c0_i32 = arith.constant 0 : i32
    %c0_i32_0 = arith.constant 0 : i32
    %c0_i32_1 = arith.constant 0 : i32
    return %c0_i32, %c0_i32_0 : i32, i32
  }
  func.func @transform_5(%arg0: i32) -> (i32, i32) {
    %c0_i32 = arith.constant 0 : i32
    %c0_i32_0 = arith.constant 0 : i32
    %c0_i32_1 = arith.constant 0 : i32
    return %c0_i32, %c0_i32_0 : i32, i32
  }
  func.func @transform_6(%arg0: i32) -> (i32, i32) {
    %c0_i32 = arith.constant 0 : i32
    %c0_i32_0 = arith.constant 0 : i32
    %c0_i32_1 = arith.constant 0 : i32
    return %c0_i32, %c0_i32_0 : i32, i32
  }
  func.func @transform_7(%arg0: i32) -> (i32, i32) {
    %c0_i32 = arith.constant 0 : i32
    %c0_i32_0 = arith.constant 0 : i32
    %c0_i32_1 = arith.constant 0 : i32
    return %c0_i32, %c0_i32_0 : i32, i32
  }
  func.func @transform_8(%arg0: i32) -> (i32, i32) {
    %c0_i32 = arith.constant 0 : i32
    %c0_i32_0 = arith.constant 0 : i32
    %c0_i32_1 = arith.constant 0 : i32
    return %c0_i32, %c0_i32_0 : i32, i32
  }
  func.func @transform_9(%arg0: i32) -> (i32, i32) {
    %c0_i32 = arith.constant 0 : i32
    %c0_i32_0 = arith.constant 0 : i32
    %c0_i32_1 = arith.constant 0 : i32
    return %c0_i32, %c0_i32_0 : i32, i32
  }
  func.func @transform_10(%arg0: i32) -> (i32, i32) {
    %c0_i32 = arith.constant 0 : i32
    %c0_i32_0 = arith.constant 0 : i32
    %c0_i32_1 = arith.constant 0 : i32
    return %c0_i32, %c0_i32_0 : i32, i32
  }
  func.func @transform_11(%arg0: i32) -> (i32, i32) {
    %c0_i32 = arith.constant 0 : i32
    %c0_i32_0 = arith.constant 0 : i32
    %c0_i32_1 = arith.constant 0 : i32
    return %c0_i32, %c0_i32_0 : i32, i32
  }
  func.func @transform_12(%arg0: i32) -> (i32, i32) {
    %c0_i32 = arith.constant 0 : i32
    %c0_i32_0 = arith.constant 0 : i32
    %c0_i32_1 = arith.constant 0 : i32
    return %c0_i32, %c0_i32_0 : i32, i32
  }
  func.func @transform_13(%arg0: i32) -> (i32, i32) {
    %c0_i32 = arith.constant 0 : i32
    %c0_i32_0 = arith.constant 0 : i32
    %c0_i32_1 = arith.constant 0 : i32
    return %c0_i32, %c0_i32_0 : i32, i32
  }
  func.func @transform_14(%arg0: i32) -> (i32, i32) {
    %c0_i32 = arith.constant 0 : i32
    %c0_i32_0 = arith.constant 0 : i32
    %c0_i32_1 = arith.constant 0 : i32
    return %c0_i32, %c0_i32_0 : i32, i32
  }
  func.func @transform_15(%arg0: i32) -> (i32, i32, i32) {
    %c0_i32 = arith.constant 0 : i32
    %c0_i32_0 = arith.constant 0 : i32
    %c0_i32_1 = arith.constant 0 : i32
    return %arg0, %c0_i32, %c0_i32_0 : i32, i32, i32
  }
}

</mosaic_0001>

<llo_original>
// kernel: tpu_custom_call.1
$region0: #{tpu_custom_call.1}
  #allocation0 [shape = 'u32[]', space=smem, size = 0x4, offset = 0x4, fixed_abs, tag = 'smem constant byte address 0x4 - core index']
  #allocation1 [shape = 'u32[144,128]{1,0:T(1,128)}', space=vmem, size = 0x12000, scoped, tag = 'internal scratch']
  %s0 = inlined_call_operand.vmem [shape: f32[2,8,32], index: 0, kind: input, shape index: {}]
  %s1 = inlined_call_operand.vmem [shape: bf16[32,96], index: 1, kind: input, shape index: {}]
  %s2 = inlined_call_operand.vmem [shape: f32[1,96], index: 2, kind: input, shape index: {}]
  %s3 = inlined_call_operand.vmem [shape: bf16[32,32], index: 3, kind: input, shape index: {}]
  %s4 = inlined_call_operand.vmem [shape: f32[1,32], index: 4, kind: input, shape index: {}]
  %s5 = inlined_call_operand.hbm [shape: bf16[32,32], index: 5, kind: input, shape index: {}]
  %s6 = inlined_call_operand.hbm [shape: f32[1,32], index: 6, kind: input, shape index: {}]
  %s7 = inlined_call_operand.hbm [shape: f32[1,32], index: 7, kind: input, shape index: {}]
  %s8 = inlined_call_operand.hbm [shape: f32[1,32], index: 8, kind: input, shape index: {}]
  %s9 = inlined_call_operand.hbm [shape: f32[1,32], index: 9, kind: input, shape index: {}]
  %s10 = inlined_call_operand.vmem [shape: f32[1,32], index: 10, kind: input, shape index: {}]
  %s11 = inlined_call_operand.vmem [shape: bf16[32,64], index: 11, kind: input, shape index: {}]
  %s12 = inlined_call_operand.vmem [shape: f32[1,64], index: 12, kind: input, shape index: {}]
  %s13 = inlined_call_operand.vmem [shape: bf16[64,32], index: 13, kind: input, shape index: {}]
  %s14 = inlined_call_operand.vmem [shape: f32[1,32], index: 14, kind: input, shape index: {}]
  %s15 = inlined_call_operand.hbm [shape: f32[2,8,32], index: 15, kind: output, shape index: {}]
  %s16 = sld [smem:[#allocation0]]
  $region90: #{tpu_custom_call.1} parent=0
    _
  %s18 = ssub.s32 1, %s16
  %s19 = scalar_select 0, %s18, %s16
  $region1: #{tpu_custom_call.1} parent=0
    #allocation2 [shape = 'u8[8192]{0}', space=vmem, size = 0x2000, scoped, tag = 'input window, operand 5, single buffered']
    #allocation3 [shape = 's32[1]{0}', space=sflag, size = 0x4, scoped, tag = 'scoped memory for tpu_custom_call.1']
    #allocation4 [shape = 's32[1]{0}', space=sflag, size = 0x4, scoped, tag = 'scoped memory for tpu_custom_call.1']
    #allocation5 [shape = 'u8[512]{0}', space=vmem, size = 0x400, scoped, tag = 'input window, operand 6, single buffered']
    #allocation6 [shape = 's32[1]{0}', space=sflag, size = 0x4, scoped, tag = 'scoped memory for tpu_custom_call.1']
    #allocation7 [shape = 'u8[512]{0}', space=vmem, size = 0x400, scoped, tag = 'input window, operand 7, single buffered']
    #allocation8 [shape = 'u8[512]{0}', space=vmem, size = 0x400, scoped, tag = 'input window, operand 8, single buffered']
    #allocation9 [shape = 's32[1]{0}', space=sflag, size = 0x4, scoped, tag = 'scoped memory for tpu_custom_call.1']
    #allocation10 [shape = 'u8[512]{0}', space=vmem, size = 0x400, scoped, tag = 'input window, operand 9, single buffered']
    #allocation11 [shape = 'u8[8192]{0}', space=vmem, size = 0x2000, scoped, tag = 'output window, operand 0, single buffered']
    %20 = vsyncpa [#allocation3], 0
    %21 = vsyncpa [#allocation6], 0
    %22 = vsyncpa [#allocation9], 0
    %23 = vsyncpa [#allocation4], 0
    // Predicated region
    $region2: #{tpu_custom_call.1} parent=1 // pred_check
      _
    $region3: #{tpu_custom_call.1} parent=1 // pred_check_branch
      %25 = sbr.rel (0) target = $region5
    $region4: #{tpu_custom_call.1} parent=1 // pred_region
      _
    $region5: #{tpu_custom_call.1} parent=1 // pred_fallthru
      _
    // Predicated region
    $region6: #{tpu_custom_call.1} parent=1 // pred_check
      _
    $region7: #{tpu_custom_call.1} parent=1 // pred_check_branch
      %27 = sbr.rel (0) target = $region9
    $region8: #{tpu_custom_call.1} parent=1 // pred_region
      _
    $region9: #{tpu_custom_call.1} parent=1 // pred_fallthru
      _
    // Predicated region
    $region10: #{tpu_custom_call.1} parent=1 // pred_check
      _
    $region11: #{tpu_custom_call.1} parent=1 // pred_check_branch
      %29 = sbr.rel (0) target = $region13
    $region12: #{tpu_custom_call.1} parent=1 // pred_region
      _
    $region13: #{tpu_custom_call.1} parent=1 // pred_fallthru
      _
    // Predicated region
    $region14: #{tpu_custom_call.1} parent=1 // pred_check
      _
    $region15: #{tpu_custom_call.1} parent=1 // pred_check_branch
      %31 = sbr.rel (0) target = $region17
    $region16: #{tpu_custom_call.1} parent=1 // pred_region
      _
    $region17: #{tpu_custom_call.1} parent=1 // pred_fallthru
      _
    // Predicated region
    $region18: #{tpu_custom_call.1} parent=1 // pred_check
      _
    $region19: #{tpu_custom_call.1} parent=1 // pred_check_branch
      %33 = sbr.rel (0) target = $region21
    $region20: #{tpu_custom_call.1} parent=1 // pred_region
      _
    $region21: #{tpu_custom_call.1} parent=1 // pred_fallthru
      _
    // Predicated region
    $region22: #{tpu_custom_call.1} parent=1 // pred_check
      _
    $region23: #{tpu_custom_call.1} parent=1 // pred_check_branch
      %35 = sbr.rel (0) target = $region25
    $region24: #{tpu_custom_call.1} parent=1 // pred_region
      %s37 = ssub.s32 256, 256
      %38 = vsyncadd [#allocation3], %s37
      %s39 = sshll.u32 [#allocation2], 4
      %s40 = int_to_ptr.vmem [resolvable:$true] %s39
      %45 = dma.hbm_to_vmem [thread:$0]  %s5, 256, %s40, [#allocation3], 64, 64, 4
    $region25: #{tpu_custom_call.1} parent=1 // pred_fallthru
      _
    // Predicated region
    $region26: #{tpu_custom_call.1} parent=1 // pred_check
      _
    $region27: #{tpu_custom_call.1} parent=1 // pred_check_branch
      %47 = sbr.rel (0) target = $region29
    $region28: #{tpu_custom_call.1} parent=1 // pred_region
      %s49 = ssub.s32 16, 16
      %50 = vsyncadd [#allocation6], %s49
      %s52 = sshll.u32 [#allocation5], 4
      %s53 = int_to_ptr.vmem [resolvable:$true] %s52
      %55 = dma.hbm_to_vmem [thread:$0]  %s6, 16, %s53, [#allocation6]
    $region29: #{tpu_custom_call.1} parent=1 // pred_fallthru
      _
    // Predicated region
    $region30: #{tpu_custom_call.1} parent=1 // pred_check
      _
    $region31: #{tpu_custom_call.1} parent=1 // pred_check_branch
      %57 = sbr.rel (0) target = $region33
    $region32: #{tpu_custom_call.1} parent=1 // pred_region
      %s59 = ssub.s32 16, 16
      %60 = vsyncadd [#allocation6], %s59
      %s62 = sshll.u32 [#allocation7], 4
      %s63 = int_to_ptr.vmem [resolvable:$true] %s62
      %65 = dma.hbm_to_vmem [thread:$0]  %s7, 16, %s63, [#allocation6]
    $region33: #{tpu_custom_call.1} parent=1 // pred_fallthru
      _
    // Predicated region
    $region34: #{tpu_custom_call.1} parent=1 // pred_check
      _
    $region35: #{tpu_custom_call.1} parent=1 // pred_check_branch
      %67 = sbr.rel (0) target = $region37
    $region36: #{tpu_custom_call.1} parent=1 // pred_region
      %s69 = ssub.s32 16, 16
      %70 = vsyncadd [#allocation9], %s69
      %s72 = sshll.u32 [#allocation8], 4
      %s73 = int_to_ptr.vmem [resolvable:$true] %s72
      %75 = dma.hbm_to_vmem [thread:$0]  %s8, 16, %s73, [#allocation9]
    $region37: #{tpu_custom_call.1} parent=1 // pred_fallthru
      _
    // Predicated region
    $region38: #{tpu_custom_call.1} parent=1 // pred_check
      _
    $region39: #{tpu_custom_call.1} parent=1 // pred_check_branch
      %77 = sbr.rel (0) target = $region41
    $region40: #{tpu_custom_call.1} parent=1 // pred_region
      %s79 = ssub.s32 16, 16
      %80 = vsyncadd [#allocation9], %s79
      %s82 = sshll.u32 [#allocation10], 4
      %s83 = int_to_ptr.vmem [resolvable:$true] %s82
      %85 = dma.hbm_to_vmem [thread:$0]  %s9, 16, %s83, [#allocation9]
    $region41: #{tpu_custom_call.1} parent=1 // pred_fallthru
      _
    // Predicated region
    $region42: #{tpu_custom_call.1} parent=1 // pred_check
      _
    $region43: #{tpu_custom_call.1} parent=1 // pred_check_branch
      %87 = sbr.rel (0) target = $region45
    $region44: #{tpu_custom_call.1} parent=1 // pred_region
      _
    $region45: #{tpu_custom_call.1} parent=1 // pred_fallthru
      _
    // Predicated region
    $region46: #{tpu_custom_call.1} parent=1 // pred_check
      _
    $region47: #{tpu_custom_call.1} parent=1 // pred_check_branch
      %89 = sbr.rel (0) target = $region49
    $region48: #{tpu_custom_call.1} parent=1 // pred_region
      _
    $region49: #{tpu_custom_call.1} parent=1 // pred_fallthru
      _
    // Predicated region
    $region50: #{tpu_custom_call.1} parent=1 // pred_check
      _
    $region51: #{tpu_custom_call.1} parent=1 // pred_check_branch
      %91 = sbr.rel (0) target = $region53
    $region52: #{tpu_custom_call.1} parent=1 // pred_region
      _
    $region53: #{tpu_custom_call.1} parent=1 // pred_fallthru
      _
    // Predicated region
    $region54: #{tpu_custom_call.1} parent=1 // pred_check
      _
    $region55: #{tpu_custom_call.1} parent=1 // pred_check_branch
      %93 = sbr.rel (0) target = $region57
    $region56: #{tpu_custom_call.1} parent=1 // pred_region
      _
    $region57: #{tpu_custom_call.1} parent=1 // pred_fallthru
      _
    // Predicated region
    $region58: #{tpu_custom_call.1} parent=1 // pred_check
      _
    $region59: #{tpu_custom_call.1} parent=1 // pred_check_branch
      %95 = sbr.rel (0) target = $region61
    $region60: #{tpu_custom_call.1} parent=1 // pred_region
      _
    $region61: #{tpu_custom_call.1} parent=1 // pred_fallthru
      _
    // Predicated region
    $region62: #{tpu_custom_call.1} parent=1 // pred_check
      _
    $region63: #{tpu_custom_call.1} parent=1 // pred_check_branch
      %97 = sbr.rel (0) target = $region65
    $region64: #{tpu_custom_call.1} parent=1 // pred_region
      %98 = dma.done [#allocation3], 256
    $region65: #{tpu_custom_call.1} parent=1 // pred_fallthru
      _
    // Predicated region
    $region66: #{tpu_custom_call.1} parent=1 // pred_check
      _
    $region67: #{tpu_custom_call.1} parent=1 // pred_check_branch
      %100 = sbr.rel (0) target = $region69
    $region68: #{tpu_custom_call.1} parent=1 // pred_region
      %101 = dma.done [#allocation6], 16
    $region69: #{tpu_custom_call.1} parent=1 // pred_fallthru
      _
    // Predicated region
    $region70: #{tpu_custom_call.1} parent=1 // pred_check
      _
    $region71: #{tpu_custom_call.1} parent=1 // pred_check_branch
      %103 = sbr.rel (0) target = $region73
    $region72: #{tpu_custom_call.1} parent=1 // pred_region
      %104 = dma.done [#allocation6], 16
    $region73: #{tpu_custom_call.1} parent=1 // pred_fallthru
      _
    // Predicated region
    $region74: #{tpu_custom_call.1} parent=1 // pred_check
      _
    $region75: #{tpu_custom_call.1} parent=1 // pred_check_branch
      %106 = sbr.rel (0) target = $region77
    $region76: #{tpu_custom_call.1} parent=1 // pred_region
      %107 = dma.done [#allocation9], 16
    $region77: #{tpu_custom_call.1} parent=1 // pred_fallthru
      _
    // Predicated region
    $region78: #{tpu_custom_call.1} parent=1 // pred_check
      _
    $region79: #{tpu_custom_call.1} parent=1 // pred_check_branch
      %109 = sbr.rel (0) target = $region81
    $region80: #{tpu_custom_call.1} parent=1 // pred_region
      %110 = dma.done [#allocation9], 16
    $region81: #{tpu_custom_call.1} parent=1 // pred_fallthru
      _
    %v112 = vld [vmem:[%s0] sm:$0xff]
    %v113 = vld [vmem:[%s0 + $0x8] sm:$0xff]
    %v114 = vld [vmem:[#allocation7] sm:$0x1]
    %v115 = vld [vmem:[#allocation8] sm:$0x1]
    %vm116 = vcmask 261120
    %v117 = vsel %vm116, %v112, 0.0
    %118 = vadd.xlane.f32.xlu0 %v117
    %v119 = vpop.xlane.xlu0 %118
    %v120 = vsel %vm116, %v113, 0.0
    %121 = vadd.xlane.f32.xlu0 %v120
    %v122 = vpop.xlane.xlu0 %121
    %v123 = vrcp.pop 32.0
    %v124 = vmul.f32 %v119, %v123
    %v125 = vmul.f32 %v122, %v123
    %v126 = vsub.f32 %v112, %v124
    %v127 = vsub.f32 %v113, %v125
    %v128 = vmul.f32 %v126, %v126
    %v129 = vmul.f32 %v127, %v127
    %v130 = vsel %vm116, %v128, 0.0
    %131 = vadd.xlane.f32.xlu0 %v130
    %v132 = vpop.xlane.xlu0 %131
    %v133 = vsel %vm116, %v129, 0.0
    %134 = vadd.xlane.f32.xlu0 %v133
    %v135 = vpop.xlane.xlu0 %134
    %v136 = vmul.f32 %v132, %v123
    %v137 = vmul.f32 %v135, %v123
    %v138 = vadd.f32 %v136, 1e-05
    %v139 = vadd.f32 %v137, 1e-05
    %v140 = vrsqrt.pop %v138
    %v141 = vrsqrt.pop %v139
    %v142 = vmul.f32 %v126, %v140
    %v143 = vmul.f32 %v127, %v141
    %v145 = vlaneseq
    %v146 = vshrl.u32 %v145, 7
    %v147 = vsub.s32 0, %v146
    %v148 = vrot.slane %v114, %v147
    %v150 = vmul.f32 %v142, %v148
    %v151 = vmul.f32 %v143, %v148
    %v153 = vlaneseq
    %v154 = vshrl.u32 %v153, 7
    %v155 = vsub.s32 0, %v154
    %v156 = vrot.slane %v115, %v155
    %v158 = vadd.f32 %v150, %v156
    %v159 = vadd.f32 %v151, %v156
    %v160 = vpack.c.bf16 %v159, %v158
    %v161 = vld [vmem:[%s1] sm:$0xf]
    %v162 = vld [vmem:[%s1 + $0x4] sm:$0xf]
    %v163 = vld [vmem:[%s1 + $0x8] sm:$0xf]
    %v164 = vld [vmem:[%s1 + $0xc] sm:$0xf]
    %v165 = vld [vmem:[%s2] sm:$0x1]
    %v167 = vlaneseq
    %v168 = vshrl.u32 %v167, 7
    %v169 = vsub.s32 0, %v168
    %v170 = vrot.slane %v165, %v169
    %v176 = vunpack.c.l.b16 %v161
    %v177 = vunpack.c.l.b16 %v162
    %v178 = vunpack.c.l.b16 %v163
    %v179 = vunpack.c.l.b16 %v164
    %v180 = vpack.c.b16 %v177, %v176
    %v181 = vpack.c.b16 %v179, %v178
    %v185 = vsel %vm116, %v160, 0
    %187 = vmatprep.subr.bf16.mxu0 0
    %188 = vmatpush1.bf16.msra.mxu0 %v180
    %189 = vmatprep.subr.bf16.mxu0 0
    %190 = vmatpush1.bf16.msra.mxu0 %v181
    %191 = vmatprep.subr.bf16.mxu0 0
    %192 = vmatpush1.bf16.msra.mxu0 0
    %193 = vmatprep.subr.bf16.mxu0 0
    %194 = vmatpush1.bf16.msra.mxu0 0
    %195 = vmatprep.subr.bf16.mxu0 0
    %196 = vmatpush1.bf16.msra.mxu0 0
    %197 = vmatprep.subr.bf16.mxu0 0
    %198 = vmatpush1.bf16.msra.mxu0 0
    %199 = vmatprep.subr.bf16.mxu0 0
    %200 = vmatpush1.bf16.msra.mxu0 0
    %201 = vmatprep.subr.bf16.mxu0 0
    %202 = vmatpush1.bf16.msra.mxu0 0
    %203 = vmatprep.subr.bf16.mxu0 0
    %204 = vmatpush1.bf16.msra.mxu0 0
    %205 = vmatprep.subr.bf16.mxu0 0
    %206 = vmatpush1.bf16.msra.mxu0 0
    %207 = vmatprep.subr.bf16.mxu0 0
    %208 = vmatpush1.bf16.msra.mxu0 0
    %209 = vmatprep.subr.bf16.mxu0 0
    %210 = vmatpush1.bf16.msra.mxu0 0
    %211 = vmatprep.subr.bf16.mxu0 0
    %212 = vmatpush1.bf16.msra.mxu0 0
    %213 = vmatprep.subr.bf16.mxu0 0
    %214 = vmatpush1.bf16.msra.mxu0 0
    %215 = vmatprep.subr.bf16.mxu0 0
    %216 = vmatpush1.bf16.msra.mxu0 0
    %217 = vmatprep.subr.bf16.mxu0 0
    %218 = vmatpush1.bf16.msra.mxu0 0
    %219 = vmatprep.mubr.bf16.mxu0 0
    %220 = vmatmul.mubr.bf16.gmra.mrb[0].mxu0 %v185
    %v221 = vpop.f32.mrb[0].mxu0
    %v222 = vadd.f32 %v170, %v221
    %v223 = vpop.f32.mrb[0].mxu0
    %v224 = vpop.f32.mrb[0].mxu0
    %v225 = vadd.f32 %v170, %v224
    %v226 = vpop.f32.mrb[0].mxu0
    %227 = vdwg.mxu0
    %v228 = vpack.c.bf16 %v225, %v222
    %v230 = vunpack.c.l.b16 %v228
    %v231 = vunpack.c.h.b16 %v228
    %v232 = vpack.c.b16 %v230, %v230
    %v233 = vpack.c.b16 %v231, %v231
    %234 = vrot.lane.b32.xlu0 %v232, 96
    %v235 = vpop.permute.xlu0 %234
    %vm236 = vcmask 64512
    %v238 = vsel %vm236, %v232, 0
    %v241 = vsel %vm236, %v235, 0
    %243 = vmatprep.subr.bf16.mxu0 0
    %244 = vmatpush1.bf16.xpose.msra.mxu0 %v241
    %245 = vmatprep.subr.bf16.mxu0 0
    %246 = vmatpush1.bf16.xpose.msra.mxu0 0
    %247 = vmatprep.subr.bf16.mxu0 0
    %248 = vmatpush1.bf16.xpose.msra.mxu0 0
    %249 = vmatprep.subr.bf16.mxu0 0
    %250 = vmatpush1.bf16.xpose.msra.mxu0 0
    %251 = vmatprep.subr.bf16.mxu0 0
    %252 = vmatpush1.bf16.xpose.msra.mxu0 0
    %253 = vmatprep.subr.bf16.mxu0 0
    %254 = vmatpush1.bf16.xpose.msra.mxu0 0
    %255 = vmatprep.subr.bf16.mxu0 0
    %256 = vmatpush1.bf16.xpose.msra.mxu0 0
    %257 = vmatprep.subr.bf16.mxu0 0
    %258 = vmatpush1.bf16.xpose.msra.mxu0 0
    %259 = vmatprep.subr.bf16.mxu0 0
    %260 = vmatpush1.bf16.xpose.msra.mxu0 0
    %261 = vmatprep.subr.bf16.mxu0 0
    %262 = vmatpush1.bf16.xpose.msra.mxu0 0
    %263 = vmatprep.subr.bf16.mxu0 0
    %264 = vmatpush1.bf16.xpose.msra.mxu0 0
    %265 = vmatprep.subr.bf16.mxu0 0
    %266 = vmatpush1.bf16.xpose.msra.mxu0 0
    %267 = vmatprep.subr.bf16.mxu0 0
    %268 = vmatpush1.bf16.xpose.msra.mxu0 0
    %269 = vmatprep.subr.bf16.mxu0 0
    %270 = vmatpush1.bf16.xpose.msra.mxu0 0
    %271 = vmatprep.subr.bf16.mxu0 0
    %272 = vmatpush1.bf16.xpose.msra.mxu0 0
    %273 = vmatprep.subr.bf16.mxu0 0
    %274 = vmatpush1.bf16.xpose.msra.mxu0 0
    %275 = vmatprep.mubr.bf16.mxu0 0
    %276 = vmatmul.mubr.bf16.gmra.mrb[0].mxu0 %v238
    %v277 = vpop.f32.mrb[0].mxu0
    %v278 = vadd.f32 0.0, %v277
    %v279 = vpop.f32.mrb[0].mxu0
    %v280 = vpop.f32.mrb[0].mxu0
    %v281 = vpop.f32.mrb[0].mxu0
    %282 = vdwg.mxu0
    %283 = vrot.lane.b32.xlu0 %v233, 96
    %v284 = vpop.permute.xlu0 %283
    %v286 = vsel %vm236, %v233, 0
    %v289 = vsel %vm236, %v284, 0
    %291 = vmatprep.subr.bf16.mxu0 0
    %292 = vmatpush1.bf16.xpose.msra.mxu0 %v289
    %293 = vmatprep.subr.bf16.mxu0 0
    %294 = vmatpush1.bf16.xpose.msra.mxu0 0
    %295 = vmatprep.subr.bf16.mxu0 0
    %296 = vmatpush1.bf16.xpose.msra.mxu0 0
    %297 = vmatprep.subr.bf16.mxu0 0
    %298 = vmatpush1.bf16.xpose.msra.mxu0 0
    %299 = vmatprep.subr.bf16.mxu0 0
    %300 = vmatpush1.bf16.xpose.msra.mxu0 0
    %301 = vmatprep.subr.bf16.mxu0 0
    %302 = vmatpush1.bf16.xpose.msra.mxu0 0
    %303 = vmatprep.subr.bf16.mxu0 0
    %304 = vmatpush1.bf16.xpose.msra.mxu0 0
    %305 = vmatprep.subr.bf16.mxu0 0
    %306 = vmatpush1.bf16.xpose.msra.mxu0 0
    %307 = vmatprep.subr.bf16.mxu0 0
    %308 = vmatpush1.bf16.xpose.msra.mxu0 0
    %309 = vmatprep.subr.bf16.mxu0 0
    %310 = vmatpush1.bf16.xpose.msra.mxu0 0
    %311 = vmatprep.subr.bf16.mxu0 0
    %312 = vmatpush1.bf16.xpose.msra.mxu0 0
    %313 = vmatprep.subr.bf16.mxu0 0
    %314 = vmatpush1.bf16.xpose.msra.mxu0 0
    %315 = vmatprep.subr.bf16.mxu0 0
    %316 = vmatpush1.bf16.xpose.msra.mxu0 0
    %317 = vmatprep.subr.bf16.mxu0 0
    %318 = vmatpush1.bf16.xpose.msra.mxu0 0
    %319 = vmatprep.subr.bf16.mxu0 0
    %320 = vmatpush1.bf16.xpose.msra.mxu0 0
    %321 = vmatprep.subr.bf16.mxu0 0
    %322 = vmatpush1.bf16.xpose.msra.mxu0 0
    %323 = vmatprep.mubr.bf16.mxu0 0
    %324 = vmatmul.mubr.bf16.gmra.mrb[0].mxu0 %v286
    %v325 = vpop.f32.mrb[0].mxu0
    %v326 = vadd.f32 0.0, %v325
    %v327 = vpop.f32.mrb[0].mxu0
    %v328 = vpop.f32.mrb[0].mxu0
    %v329 = vpop.f32.mrb[0].mxu0
    %330 = vdwg.mxu0
    %v331 = vsel %vm236, %v278, -inf
    %332 = vmax.xlane.f32.xlu0 %v331
    %v333 = vpop.xlane.xlu0 %332
    %v334 = vsel %vm236, %v326, -inf
    %335 = vmax.xlane.f32.xlu0 %v334
    %v336 = vpop.xlane.xlu0 %335
    %v337 = vsub.f32 %v278, %v333
    %v338 = vsub.f32 %v326, %v336
    %v339 = vmul.f32 %v337, 1.442695
    %v340 = vpow.pop %v339
    %v341 = vmul.f32 %v338, 1.442695
    %v342 = vpow.pop %v341
    %v343 = vsel %vm236, %v340, 0.0
    %344 = vadd.xlane.f32.xlu0 %v343
    %v345 = vpop.xlane.xlu0 %344
    %v346 = vsel %vm236, %v342, 0.0
    %347 = vadd.xlane.f32.xlu0 %v346
    %v348 = vpop.xlane.xlu0 %347
    %v349 = vrcp.pop %v345
    %v350 = vrcp.pop %v348
    %v351 = vmul.f32 %v340, %v349
    %v352 = vmul.f32 %v342, %v350
    %v353 = vpack.c.bf16 %v351, %v351
    %v354 = vpack.c.bf16 %v352, %v352
    %355 = vrot.lane.b32.xlu0 %v232, 64
    %v356 = vpop.permute.xlu0 %355
    %v358 = vsel %vm236, %v353, 0
    %vm360 = vcmask 1043456
    %v362 = vsel %vm360, %v356, 0
    %364 = vmatprep.subr.bf16.mxu0 0
    %365 = vmatpush1.bf16.msra.mxu0 %v362
    %366 = vmatprep.subr.bf16.mxu0 0
    %367 = vmatpush1.bf16.msra.mxu0 0
    %368 = vmatprep.subr.bf16.mxu0 0
    %369 = vmatpush1.bf16.msra.mxu0 0
    %370 = vmatprep.subr.bf16.mxu0 0
    %371 = vmatpush1.bf16.msra.mxu0 0
    %372 = vmatprep.subr.bf16.mxu0 0
    %373 = vmatpush1.bf16.msra.mxu0 0
    %374 = vmatprep.subr.bf16.mxu0 0
    %375 = vmatpush1.bf16.msra.mxu0 0
    %376 = vmatprep.subr.bf16.mxu0 0
    %377 = vmatpush1.bf16.msra.mxu0 0
    %378 = vmatprep.subr.bf16.mxu0 0
    %379 = vmatpush1.bf16.msra.mxu0 0
    %380 = vmatprep.subr.bf16.mxu0 0
    %381 = vmatpush1.bf16.msra.mxu0 0
    %382 = vmatprep.subr.bf16.mxu0 0
    %383 = vmatpush1.bf16.msra.mxu0 0
    %384 = vmatprep.subr.bf16.mxu0 0
    %385 = vmatpush1.bf16.msra.mxu0 0
    %386 = vmatprep.subr.bf16.mxu0 0
    %387 = vmatpush1.bf16.msra.mxu0 0
    %388 = vmatprep.subr.bf16.mxu0 0
    %389 = vmatpush1.bf16.msra.mxu0 0
    %390 = vmatprep.subr.bf16.mxu0 0
    %391 = vmatpush1.bf16.msra.mxu0 0
    %392 = vmatprep.subr.bf16.mxu0 0
    %393 = vmatpush1.bf16.msra.mxu0 0
    %394 = vmatprep.subr.bf16.mxu0 0
    %395 = vmatpush1.bf16.msra.mxu0 0
    %396 = vmatprep.mubr.bf16.mxu0 0
    %397 = vmatmul.mubr.bf16.gmra.mrb[0].mxu0 %v358
    %v398 = vpop.f32.mrb[0].mxu0
    %v399 = vadd.f32 0.0, %v398
    %v400 = vpop.f32.mrb[0].mxu0
    %v401 = vpop.f32.mrb[0].mxu0
    %v402 = vpop.f32.mrb[0].mxu0
    %403 = vdwg.mxu0
    %404 = vrot.lane.b32.xlu0 %v233, 64
    %v405 = vpop.permute.xlu0 %404
    %v407 = vsel %vm236, %v354, 0
    %v410 = vsel %vm360, %v405, 0
    %412 = vmatprep.subr.bf16.mxu0 0
    %413 = vmatpush1.bf16.msra.mxu0 %v410
    %414 = vmatprep.subr.bf16.mxu0 0
    %415 = vmatpush1.bf16.msra.mxu0 0
    %416 = vmatprep.subr.bf16.mxu0 0
    %417 = vmatpush1.bf16.msra.mxu0 0
    %418 = vmatprep.subr.bf16.mxu0 0
    %419 = vmatpush1.bf16.msra.mxu0 0
    %420 = vmatprep.subr.bf16.mxu0 0
    %421 = vmatpush1.bf16.msra.mxu0 0
    %422 = vmatprep.subr.bf16.mxu0 0
    %423 = vmatpush1.bf16.msra.mxu0 0
    %424 = vmatprep.subr.bf16.mxu0 0
    %425 = vmatpush1.bf16.msra.mxu0 0
    %426 = vmatprep.subr.bf16.mxu0 0
    %427 = vmatpush1.bf16.msra.mxu0 0
    %428 = vmatprep.subr.bf16.mxu0 0
    %429 = vmatpush1.bf16.msra.mxu0 0
    %430 = vmatprep.subr.bf16.mxu0 0
    %431 = vmatpush1.bf16.msra.mxu0 0
    %432 = vmatprep.subr.bf16.mxu0 0
    %433 = vmatpush1.bf16.msra.mxu0 0
    %434 = vmatprep.subr.bf16.mxu0 0
    %435 = vmatpush1.bf16.msra.mxu0 0
    %436 = vmatprep.subr.bf16.mxu0 0
    %437 = vmatpush1.bf16.msra.mxu0 0
    %438 = vmatprep.subr.bf16.mxu0 0
    %439 = vmatpush1.bf16.msra.mxu0 0
    %440 = vmatprep.subr.bf16.mxu0 0
    %441 = vmatpush1.bf16.msra.mxu0 0
    %442 = vmatprep.subr.bf16.mxu0 0
    %443 = vmatpush1.bf16.msra.mxu0 0
    %444 = vmatprep.mubr.bf16.mxu0 0
    %445 = vmatmul.mubr.bf16.gmra.mrb[0].mxu0 %v407
    %v446 = vpop.f32.mrb[0].mxu0
    %v447 = vadd.f32 0.0, %v446
    %v448 = vpop.f32.mrb[0].mxu0
    %v449 = vpop.f32.mrb[0].mxu0
    %v450 = vpop.f32.mrb[0].mxu0
    %451 = vdwg.mxu0
    %452 = vrot.lane.b32.xlu0 %v232, 120
    %v453 = vpop.permute.xlu0 %452
    %454 = vrot.lane.b32.xlu0 %v232, 88
    %v455 = vpop.permute.xlu0 %454
    %v457 = vsel %vm236, %v453, 0
    %v460 = vsel %vm236, %v455, 0
    %462 = vmatprep.subr.bf16.mxu0 0
    %463 = vmatpush1.bf16.xpose.msra.mxu0 %v460
    %464 = vmatprep.subr.bf16.mxu0 0
    %465 = vmatpush1.bf16.xpose.msra.mxu0 0
    %466 = vmatprep.subr.bf16.mxu0 0
    %467 = vmatpush1.bf16.xpose.msra.mxu0 0
    %468 = vmatprep.subr.bf16.mxu0 0
    %469 = vmatpush1.bf16.xpose.msra.mxu0 0
    %470 = vmatprep.subr.bf16.mxu0 0
    %471 = vmatpush1.bf16.xpose.msra.mxu0 0
    %472 = vmatprep.subr.bf16.mxu0 0
    %473 = vmatpush1.bf16.xpose.msra.mxu0 0
    %474 = vmatprep.subr.bf16.mxu0 0
    %475 = vmatpush1.bf16.xpose.msra.mxu0 0
    %476 = vmatprep.subr.bf16.mxu0 0
    %477 = vmatpush1.bf16.xpose.msra.mxu0 0
    %478 = vmatprep.subr.bf16.mxu0 0
    %479 = vmatpush1.bf16.xpose.msra.mxu0 0
    %480 = vmatprep.subr.bf16.mxu0 0
    %481 = vmatpush1.bf16.xpose.msra.mxu0 0
    %482 = vmatprep.subr.bf16.mxu0 0
    %483 = vmatpush1.bf16.xpose.msra.mxu0 0
    %484 = vmatprep.subr.bf16.mxu0 0
    %485 = vmatpush1.bf16.xpose.msra.mxu0 0
    %486 = vmatprep.subr.bf16.mxu0 0
    %487 = vmatpush1.bf16.xpose.msra.mxu0 0
    %488 = vmatprep.subr.bf16.mxu0 0
    %489 = vmatpush1.bf16.xpose.msra.mxu0 0
    %490 = vmatprep.subr.bf16.mxu0 0
    %491 = vmatpush1.bf16.xpose.msra.mxu0 0
    %492 = vmatprep.subr.bf16.mxu0 0
    %493 = vmatpush1.bf16.xpose.msra.mxu0 0
    %494 = vmatprep.mubr.bf16.mxu0 0
    %495 = vmatmul.mubr.bf16.gmra.mrb[0].mxu0 %v457
    %v496 = vpop.f32.mrb[0].mxu0
    %v497 = vadd.f32 0.0, %v496
    %v498 = vpop.f32.mrb[0].mxu0
    %v499 = vpop.f32.mrb[0].mxu0
    %v500 = vpop.f32.mrb[0].mxu0
    %501 = vdwg.mxu0
    %502 = vrot.lane.b32.xlu0 %v233, 120
    %v503 = vpop.permute.xlu0 %502
    %504 = vrot.lane.b32.xlu0 %v233, 88
    %v505 = vpop.permute.xlu0 %504
    %v507 = vsel %vm236, %v503, 0
    %v510 = vsel %vm236, %v505, 0
    %512 = vmatprep.subr.bf16.mxu0 0
    %513 = vmatpush1.bf16.xpose.msra.mxu0 %v510
    %514 = vmatprep.subr.bf16.mxu0 0
    %515 = vmatpush1.bf16.xpose.msra.mxu0 0
    %516 = vmatprep.subr.bf16.mxu0 0
    %517 = vmatpush1.bf16.xpose.msra.mxu0 0
    %518 = vmatprep.subr.bf16.mxu0 0
    %519 = vmatpush1.bf16.xpose.msra.mxu0 0
    %520 = vmatprep.subr.bf16.mxu0 0
    %521 = vmatpush1.bf16.xpose.msra.mxu0 0
    %522 = vmatprep.subr.bf16.mxu0 0
    %523 = vmatpush1.bf16.xpose.msra.mxu0 0
    %524 = vmatprep.subr.bf16.mxu0 0
    %525 = vmatpush1.bf16.xpose.msra.mxu0 0
    %526 = vmatprep.subr.bf16.mxu0 0
    %527 = vmatpush1.bf16.xpose.msra.mxu0 0
    %528 = vmatprep.subr.bf16.mxu0 0
    %529 = vmatpush1.bf16.xpose.msra.mxu0 0
    %530 = vmatprep.subr.bf16.mxu0 0
    %531 = vmatpush1.bf16.xpose.msra.mxu0 0
    %532 = vmatprep.subr.bf16.mxu0 0
    %533 = vmatpush1.bf16.xpose.msra.mxu0 0
    %534 = vmatprep.subr.bf16.mxu0 0
    %535 = vmatpush1.bf16.xpose.msra.mxu0 0
    %536 = vmatprep.subr.bf16.mxu0 0
    %537 = vmatpush1.bf16.xpose.msra.mxu0 0
    %538 = vmatprep.subr.bf16.mxu0 0
    %539 = vmatpush1.bf16.xpose.msra.mxu0 0
    %540 = vmatprep.subr.bf16.mxu0 0
    %541 = vmatpush1.bf16.xpose.msra.mxu0 0
    %542 = vmatprep.subr.bf16.mxu0 0
    %543 = vmatpush1.bf16.xpose.msra.mxu0 0
    %544 = vmatprep.mubr.bf16.mxu0 0
    %545 = vmatmul.mubr.bf16.gmra.mrb[0].mxu0 %v507
    %v546 = vpop.f32.mrb[0].mxu0
    %v547 = vadd.f32 0.0, %v546
    %v548 = vpop.f32.mrb[0].mxu0
    %v549 = vpop.f32.mrb[0].mxu0
    %v550 = vpop.f32.mrb[0].mxu0
    %551 = vdwg.mxu0
    %v552 = vsel %vm236, %v497, -inf
    %553 = vmax.xlane.f32.xlu0 %v552
    %v554 = vpop.xlane.xlu0 %553
    %v555 = vsel %vm236, %v547, -inf
    %556 = vmax.xlane.f32.xlu0 %v555
    %v557 = vpop.xlane.xlu0 %556
    %v558 = vsub.f32 %v497, %v554
    %v559 = vsub.f32 %v547, %v557
    %v560 = vmul.f32 %v558, 1.442695
    %v561 = vpow.pop %v560
    %v562 = vmul.f32 %v559, 1.442695
    %v563 = vpow.pop %v562
    %v564 = vsel %vm236, %v561, 0.0
    %565 = vadd.xlane.f32.xlu0 %v564
    %v566 = vpop.xlane.xlu0 %565
    %v567 = vsel %vm236, %v563, 0.0
    %568 = vadd.xlane.f32.xlu0 %v567
    %v569 = vpop.xlane.xlu0 %568
    %v570 = vrcp.pop %v566
    %v571 = vrcp.pop %v569
    %v572 = vmul.f32 %v561, %v570
    %v573 = vmul.f32 %v563, %v571
    %v574 = vpack.c.bf16 %v572, %v572
    %v575 = vpack.c.bf16 %v573, %v573
    %576 = vrot.lane.b32.xlu0 %v232, 56
    %v577 = vpop.permute.xlu0 %576
    %v579 = vsel %vm236, %v574, 0
    %v582 = vsel %vm360, %v577, 0
    %584 = vmatprep.subr.bf16.mxu0 0
    %585 = vmatpush1.bf16.msra.mxu0 %v582
    %586 = vmatprep.subr.bf16.mxu0 0
    %587 = vmatpush1.bf16.msra.mxu0 0
    %588 = vmatprep.subr.bf16.mxu0 0
    %589 = vmatpush1.bf16.msra.mxu0 0
    %590 = vmatprep.subr.bf16.mxu0 0
    %591 = vmatpush1.bf16.msra.mxu0 0
    %592 = vmatprep.subr.bf16.mxu0 0
    %593 = vmatpush1.bf16.msra.mxu0 0
    %594 = vmatprep.subr.bf16.mxu0 0
    %595 = vmatpush1.bf16.msra.mxu0 0
    %596 = vmatprep.subr.bf16.mxu0 0
    %597 = vmatpush1.bf16.msra.mxu0 0
    %598 = vmatprep.subr.bf16.mxu0 0
    %599 = vmatpush1.bf16.msra.mxu0 0
    %600 = vmatprep.subr.bf16.mxu0 0
    %601 = vmatpush1.bf16.msra.mxu0 0
    %602 = vmatprep.subr.bf16.mxu0 0
    %603 = vmatpush1.bf16.msra.mxu0 0
    %604 = vmatprep.subr.bf16.mxu0 0
    %605 = vmatpush1.bf16.msra.mxu0 0
    %606 = vmatprep.subr.bf16.mxu0 0
    %607 = vmatpush1.bf16.msra.mxu0 0
    %608 = vmatprep.subr.bf16.mxu0 0
    %609 = vmatpush1.bf16.msra.mxu0 0
    %610 = vmatprep.subr.bf16.mxu0 0
    %611 = vmatpush1.bf16.msra.mxu0 0
    %612 = vmatprep.subr.bf16.mxu0 0
    %613 = vmatpush1.bf16.msra.mxu0 0
    %614 = vmatprep.subr.bf16.mxu0 0
    %615 = vmatpush1.bf16.msra.mxu0 0
    %616 = vmatprep.mubr.bf16.mxu0 0
    %617 = vmatmul.mubr.bf16.gmra.mrb[0].mxu0 %v579
    %v618 = vpop.f32.mrb[0].mxu0
    %v619 = vadd.f32 0.0, %v618
    %v620 = vpop.f32.mrb[0].mxu0
    %v621 = vpop.f32.mrb[0].mxu0
    %v622 = vpop.f32.mrb[0].mxu0
    %623 = vdwg.mxu0
    %624 = vrot.lane.b32.xlu0 %v233, 56
    %v625 = vpop.permute.xlu0 %624
    %v627 = vsel %vm236, %v575, 0
    %v630 = vsel %vm360, %v625, 0
    %632 = vmatprep.subr.bf16.mxu0 0
    %633 = vmatpush1.bf16.msra.mxu0 %v630
    %634 = vmatprep.subr.bf16.mxu0 0
    %635 = vmatpush1.bf16.msra.mxu0 0
    %636 = vmatprep.subr.bf16.mxu0 0
    %637 = vmatpush1.bf16.msra.mxu0 0
    %638 = vmatprep.subr.bf16.mxu0 0
    %639 = vmatpush1.bf16.msra.mxu0 0
    %640 = vmatprep.subr.bf16.mxu0 0
    %641 = vmatpush1.bf16.msra.mxu0 0
    %642 = vmatprep.subr.bf16.mxu0 0
    %643 = vmatpush1.bf16.msra.mxu0 0
    %644 = vmatprep.subr.bf16.mxu0 0
    %645 = vmatpush1.bf16.msra.mxu0 0
    %646 = vmatprep.subr.bf16.mxu0 0
    %647 = vmatpush1.bf16.msra.mxu0 0
    %648 = vmatprep.subr.bf16.mxu0 0
    %649 = vmatpush1.bf16.msra.mxu0 0
    %650 = vmatprep.subr.bf16.mxu0 0
    %651 = vmatpush1.bf16.msra.mxu0 0
    %652 = vmatprep.subr.bf16.mxu0 0
    %653 = vmatpush1.bf16.msra.mxu0 0
    %654 = vmatprep.subr.bf16.mxu0 0
    %655 = vmatpush1.bf16.msra.mxu0 0
    %656 = vmatprep.subr.bf16.mxu0 0
    %657 = vmatpush1.bf16.msra.mxu0 0
    %658 = vmatprep.subr.bf16.mxu0 0
    %659 = vmatpush1.bf16.msra.mxu0 0
    %660 = vmatprep.subr.bf16.mxu0 0
    %661 = vmatpush1.bf16.msra.mxu0 0
    %662 = vmatprep.subr.bf16.mxu0 0
    %663 = vmatpush1.bf16.msra.mxu0 0
    %664 = vmatprep.mubr.bf16.mxu0 0
    %665 = vmatmul.mubr.bf16.gmra.mrb[0].mxu0 %v627
    %v666 = vpop.f32.mrb[0].mxu0
    %v667 = vadd.f32 0.0, %v666
    %v668 = vpop.f32.mrb[0].mxu0
    %v669 = vpop.f32.mrb[0].mxu0
    %v670 = vpop.f32.mrb[0].mxu0
    %671 = vdwg.mxu0
    %672 = vrot.lane.b32.xlu0 %v232, 112
    %v673 = vpop.permute.xlu0 %672
    %674 = vrot.lane.b32.xlu0 %v232, 80
    %v675 = vpop.permute.xlu0 %674
    %v677 = vsel %vm236, %v673, 0
    %v680 = vsel %vm236, %v675, 0
    %682 = vmatprep.subr.bf16.mxu0 0
    %683 = vmatpush1.bf16.xpose.msra.mxu0 %v680
    %684 = vmatprep.subr.bf16.mxu0 0
    %685 = vmatpush1.bf16.xpose.msra.mxu0 0
    %686 = vmatprep.subr.bf16.mxu0 0
    %687 = vmatpush1.bf16.xpose.msra.mxu0 0
    %688 = vmatprep.subr.bf16.mxu0 0
    %689 = vmatpush1.bf16.xpose.msra.mxu0 0
    %690 = vmatprep.subr.bf16.mxu0 0
    %691 = vmatpush1.bf16.xpose.msra.mxu0 0
    %692 = vmatprep.subr.bf16.mxu0 0
    %693 = vmatpush1.bf16.xpose.msra.mxu0 0
    %694 = vmatprep.subr.bf16.mxu0 0
    %695 = vmatpush1.bf16.xpose.msra.mxu0 0
    %696 = vmatprep.subr.bf16.mxu0 0
    %697 = vmatpush1.bf16.xpose.msra.mxu0 0
    %698 = vmatprep.subr.bf16.mxu0 0
    %699 = vmatpush1.bf16.xpose.msra.mxu0 0
    %700 = vmatprep.subr.bf16.mxu0 0
    %701 = vmatpush1.bf16.xpose.msra.mxu0 0
    %702 = vmatprep.subr.bf16.mxu0 0
    %703 = vmatpush1.bf16.xpose.msra.mxu0 0
    %704 = vmatprep.subr.bf16.mxu0 0
    %705 = vmatpush1.bf16.xpose.msra.mxu0 0
    %706 = vmatprep.subr.bf16.mxu0 0
    %707 = vmatpush1.bf16.xpose.msra.mxu0 0
    %708 = vmatprep.subr.bf16.mxu0 0
    %709 = vmatpush1.bf16.xpose.msra.mxu0 0
    %710 = vmatprep.subr.bf16.mxu0 0
    %711 = vmatpush1.bf16.xpose.msra.mxu0 0
    %712 = vmatprep.subr.bf16.mxu0 0
    %713 = vmatpush1.bf16.xpose.msra.mxu0 0
    %714 = vmatprep.mubr.bf16.mxu0 0
    %715 = vmatmul.mubr.bf16.gmra.mrb[0].mxu0 %v677
    %v716 = vpop.f32.mrb[0].mxu0
    %v717 = vadd.f32 0.0, %v716
    %v718 = vpop.f32.mrb[0].mxu0
    %v719 = vpop.f32.mrb[0].mxu0
    %v720 = vpop.f32.mrb[0].mxu0
    %721 = vdwg.mxu0
    %722 = vrot.lane.b32.xlu0 %v233, 112
    %v723 = vpop.permute.xlu0 %722
    %724 = vrot.lane.b32.xlu0 %v233, 80
    %v725 = vpop.permute.xlu0 %724
    %v727 = vsel %vm236, %v723, 0
    %v730 = vsel %vm236, %v725, 0
    %732 = vmatprep.subr.bf16.mxu0 0
    %733 = vmatpush1.bf16.xpose.msra.mxu0 %v730
    %734 = vmatprep.subr.bf16.mxu0 0
    %735 = vmatpush1.bf16.xpose.msra.mxu0 0
    %736 = vmatprep.subr.bf16.mxu0 0
    %737 = vmatpush1.bf16.xpose.msra.mxu0 0
    %738 = vmatprep.subr.bf16.mxu0 0
    %739 = vmatpush1.bf16.xpose.msra.mxu0 0
    %740 = vmatprep.subr.bf16.mxu0 0
    %741 = vmatpush1.bf16.xpose.msra.mxu0 0
    %742 = vmatprep.subr.bf16.mxu0 0
    %743 = vmatpush1.bf16.xpose.msra.mxu0 0
    %744 = vmatprep.subr.bf16.mxu0 0
    %745 = vmatpush1.bf16.xpose.msra.mxu0 0
    %746 = vmatprep.subr.bf16.mxu0 0
    %747 = vmatpush1.bf16.xpose.msra.mxu0 0
    %748 = vmatprep.subr.bf16.mxu0 0
    %749 = vmatpush1.bf16.xpose.msra.mxu0 0
    %750 = vmatprep.subr.bf16.mxu0 0
    %751 = vmatpush1.bf16.xpose.msra.mxu0 0
    %752 = vmatprep.subr.bf16.mxu0 0
    %753 = vmatpush1.bf16.xpose.msra.mxu0 0
    %754 = vmatprep.subr.bf16.mxu0 0
    %755 = vmatpush1.bf16.xpose.msra.mxu0 0
    %756 = vmatprep.subr.bf16.mxu0 0
    %757 = vmatpush1.bf16.xpose.msra.mxu0 0
    %758 = vmatprep.subr.bf16.mxu0 0
    %759 = vmatpush1.bf16.xpose.msra.mxu0 0
    %760 = vmatprep.subr.bf16.mxu0 0
    %761 = vmatpush1.bf16.xpose.msra.mxu0 0
    %762 = vmatprep.subr.bf16.mxu0 0
    %763 = vmatpush1.bf16.xpose.msra.mxu0 0
    %764 = vmatprep.mubr.bf16.mxu0 0
    %765 = vmatmul.mubr.bf16.gmra.mrb[0].mxu0 %v727
    %v766 = vpop.f32.mrb[0].mxu0
    %v767 = vadd.f32 0.0, %v766
    %v768 = vpop.f32.mrb[0].mxu0
    %v769 = vpop.f32.mrb[0].mxu0
    %v770 = vpop.f32.mrb[0].mxu0
    %771 = vdwg.mxu0
    %v772 = vsel %vm236, %v717, -inf
    %773 = vmax.xlane.f32.xlu0 %v772
    %v774 = vpop.xlane.xlu0 %773
    %v775 = vsel %vm236, %v767, -inf
    %776 = vmax.xlane.f32.xlu0 %v775
    %v777 = vpop.xlane.xlu0 %776
    %v778 = vsub.f32 %v717, %v774
    %v779 = vsub.f32 %v767, %v777
    %v780 = vmul.f32 %v778, 1.442695
    %v781 = vpow.pop %v780
    %v782 = vmul.f32 %v779, 1.442695
    %v783 = vpow.pop %v782
    %v784 = vsel %vm236, %v781, 0.0
    %785 = vadd.xlane.f32.xlu0 %v784
    %v786 = vpop.xlane.xlu0 %785
    %v787 = vsel %vm236, %v783, 0.0
    %788 = vadd.xlane.f32.xlu0 %v787
    %v789 = vpop.xlane.xlu0 %788
    %v790 = vrcp.pop %v786
    %v791 = vrcp.pop %v789
    %v792 = vmul.f32 %v781, %v790
    %v793 = vmul.f32 %v783, %v791
    %v794 = vpack.c.bf16 %v792, %v792
    %v795 = vpack.c.bf16 %v793, %v793
    %796 = vrot.lane.b32.xlu0 %v232, 48
    %v797 = vpop.permute.xlu0 %796
    %v799 = vsel %vm236, %v794, 0
    %v802 = vsel %vm360, %v797, 0
    %804 = vmatprep.subr.bf16.mxu0 0
    %805 = vmatpush1.bf16.msra.mxu0 %v802
    %806 = vmatprep.subr.bf16.mxu0 0
    %807 = vmatpush1.bf16.msra.mxu0 0
    %808 = vmatprep.subr.bf16.mxu0 0
    %809 = vmatpush1.bf16.msra.mxu0 0
    %810 = vmatprep.subr.bf16.mxu0 0
    %811 = vmatpush1.bf16.msra.mxu0 0
    %812 = vmatprep.subr.bf16.mxu0 0
    %813 = vmatpush1.bf16.msra.mxu0 0
    %814 = vmatprep.subr.bf16.mxu0 0
    %815 = vmatpush1.bf16.msra.mxu0 0
    %816 = vmatprep.subr.bf16.mxu0 0
    %817 = vmatpush1.bf16.msra.mxu0 0
    %818 = vmatprep.subr.bf16.mxu0 0
    %819 = vmatpush1.bf16.msra.mxu0 0
    %820 = vmatprep.subr.bf16.mxu0 0
    %821 = vmatpush1.bf16.msra.mxu0 0
    %822 = vmatprep.subr.bf16.mxu0 0
    %823 = vmatpush1.bf16.msra.mxu0 0
    %824 = vmatprep.subr.bf16.mxu0 0
    %825 = vmatpush1.bf16.msra.mxu0 0
    %826 = vmatprep.subr.bf16.mxu0 0
    %827 = vmatpush1.bf16.msra.mxu0 0
    %828 = vmatprep.subr.bf16.mxu0 0
    %829 = vmatpush1.bf16.msra.mxu0 0
    %830 = vmatprep.subr.bf16.mxu0 0
    %831 = vmatpush1.bf16.msra.mxu0 0
    %832 = vmatprep.subr.bf16.mxu0 0
    %833 = vmatpush1.bf16.msra.mxu0 0
    %834 = vmatprep.subr.bf16.mxu0 0
    %835 = vmatpush1.bf16.msra.mxu0 0
    %836 = vmatprep.mubr.bf16.mxu0 0
    %837 = vmatmul.mubr.bf16.gmra.mrb[0].mxu0 %v799
    %v838 = vpop.f32.mrb[0].mxu0
    %v839 = vadd.f32 0.0, %v838
    %v840 = vpop.f32.mrb[0].mxu0
    %v841 = vpop.f32.mrb[0].mxu0
    %v842 = vpop.f32.mrb[0].mxu0
    %843 = vdwg.mxu0
    %844 = vrot.lane.b32.xlu0 %v233, 48
    %v845 = vpop.permute.xlu0 %844
    %v847 = vsel %vm236, %v795, 0
    %v850 = vsel %vm360, %v845, 0
    %852 = vmatprep.subr.bf16.mxu0 0
    %853 = vmatpush1.bf16.msra.mxu0 %v850
    %854 = vmatprep.subr.bf16.mxu0 0
    %855 = vmatpush1.bf16.msra.mxu0 0
    %856 = vmatprep.subr.bf16.mxu0 0
    %857 = vmatpush1.bf16.msra.mxu0 0
    %858 = vmatprep.subr.bf16.mxu0 0
    %859 = vmatpush1.bf16.msra.mxu0 0
    %860 = vmatprep.subr.bf16.mxu0 0
    %861 = vmatpush1.bf16.msra.mxu0 0
    %862 = vmatprep.subr.bf16.mxu0 0
    %863 = vmatpush1.bf16.msra.mxu0 0
    %864 = vmatprep.subr.bf16.mxu0 0
    %865 = vmatpush1.bf16.msra.mxu0 0
    %866 = vmatprep.subr.bf16.mxu0 0
    %867 = vmatpush1.bf16.msra.mxu0 0
    %868 = vmatprep.subr.bf16.mxu0 0
    %869 = vmatpush1.bf16.msra.mxu0 0
    %870 = vmatprep.subr.bf16.mxu0 0
    %871 = vmatpush1.bf16.msra.mxu0 0
    %872 = vmatprep.subr.bf16.mxu0 0
    %873 = vmatpush1.bf16.msra.mxu0 0
    %874 = vmatprep.subr.bf16.mxu0 0
    %875 = vmatpush1.bf16.msra.mxu0 0
    %876 = vmatprep.subr.bf16.mxu0 0
    %877 = vmatpush1.bf16.msra.mxu0 0
    %878 = vmatprep.subr.bf16.mxu0 0
    %879 = vmatpush1.bf16.msra.mxu0 0
    %880 = vmatprep.subr.bf16.mxu0 0
    %881 = vmatpush1.bf16.msra.mxu0 0
    %882 = vmatprep.subr.bf16.mxu0 0
    %883 = vmatpush1.bf16.msra.mxu0 0
    %884 = vmatprep.mubr.bf16.mxu0 0
    %885 = vmatmul.mubr.bf16.gmra.mrb[0].mxu0 %v847
    %v886 = vpop.f32.mrb[0].mxu0
    %v887 = vadd.f32 0.0, %v886
    %v888 = vpop.f32.mrb[0].mxu0
    %v889 = vpop.f32.mrb[0].mxu0
    %v890 = vpop.f32.mrb[0].mxu0
    %891 = vdwg.mxu0
    %892 = vrot.lane.b32.xlu0 %v232, 104
    %v893 = vpop.permute.xlu0 %892
    %894 = vrot.lane.b32.xlu0 %v232, 72
    %v895 = vpop.permute.xlu0 %894
    %v897 = vsel %vm236, %v893, 0
    %v900 = vsel %vm236, %v895, 0
    %902 = vmatprep.subr.bf16.mxu0 0
    %903 = vmatpush1.bf16.xpose.msra.mxu0 %v900
    %904 = vmatprep.subr.bf16.mxu0 0
    %905 = vmatpush1.bf16.xpose.msra.mxu0 0
    %906 = vmatprep.subr.bf16.mxu0 0
    %907 = vmatpush1.bf16.xpose.msra.mxu0 0
    %908 = vmatprep.subr.bf16.mxu0 0
    %909 = vmatpush1.bf16.xpose.msra.mxu0 0
    %910 = vmatprep.subr.bf16.mxu0 0
    %911 = vmatpush1.bf16.xpose.msra.mxu0 0
    %912 = vmatprep.subr.bf16.mxu0 0
    %913 = vmatpush1.bf16.xpose.msra.mxu0 0
    %914 = vmatprep.subr.bf16.mxu0 0
    %915 = vmatpush1.bf16.xpose.msra.mxu0 0
    %916 = vmatprep.subr.bf16.mxu0 0
    %917 = vmatpush1.bf16.xpose.msra.mxu0 0
    %918 = vmatprep.subr.bf16.mxu0 0
    %919 = vmatpush1.bf16.xpose.msra.mxu0 0
    %920 = vmatprep.subr.bf16.mxu0 0
    %921 = vmatpush1.bf16.xpose.msra.mxu0 0
    %922 = vmatprep.subr.bf16.mxu0 0
    %923 = vmatpush1.bf16.xpose.msra.mxu0 0
    %924 = vmatprep.subr.bf16.mxu0 0
    %925 = vmatpush1.bf16.xpose.msra.mxu0 0
    %926 = vmatprep.subr.bf16.mxu0 0
    %927 = vmatpush1.bf16.xpose.msra.mxu0 0
    %928 = vmatprep.subr.bf16.mxu0 0
    %929 = vmatpush1.bf16.xpose.msra.mxu0 0
    %930 = vmatprep.subr.bf16.mxu0 0
    %931 = vmatpush1.bf16.xpose.msra.mxu0 0
    %932 = vmatprep.subr.bf16.mxu0 0
    %933 = vmatpush1.bf16.xpose.msra.mxu0 0
    %934 = vmatprep.mubr.bf16.mxu0 0
    %935 = vmatmul.mubr.bf16.gmra.mrb[0].mxu0 %v897
    %v936 = vpop.f32.mrb[0].mxu0
    %v937 = vadd.f32 0.0, %v936
    %v938 = vpop.f32.mrb[0].mxu0
    %v939 = vpop.f32.mrb[0].mxu0
    %v940 = vpop.f32.mrb[0].mxu0
    %941 = vdwg.mxu0
    %942 = vrot.lane.b32.xlu0 %v233, 104
    %v943 = vpop.permute.xlu0 %942
    %944 = vrot.lane.b32.xlu0 %v233, 72
    %v945 = vpop.permute.xlu0 %944
    %v947 = vsel %vm236, %v943, 0
    %v950 = vsel %vm236, %v945, 0
    %952 = vmatprep.subr.bf16.mxu0 0
    %953 = vmatpush1.bf16.xpose.msra.mxu0 %v950
    %954 = vmatprep.subr.bf16.mxu0 0
    %955 = vmatpush1.bf16.xpose.msra.mxu0 0
    %956 = vmatprep.subr.bf16.mxu0 0
    %957 = vmatpush1.bf16.xpose.msra.mxu0 0
    %958 = vmatprep.subr.bf16.mxu0 0
    %959 = vmatpush1.bf16.xpose.msra.mxu0 0
    %960 = vmatprep.subr.bf16.mxu0 0
    %961 = vmatpush1.bf16.xpose.msra.mxu0 0
    %962 = vmatprep.subr.bf16.mxu0 0
    %963 = vmatpush1.bf16.xpose.msra.mxu0 0
    %964 = vmatprep.subr.bf16.mxu0 0
    %965 = vmatpush1.bf16.xpose.msra.mxu0 0
    %966 = vmatprep.subr.bf16.mxu0 0
    %967 = vmatpush1.bf16.xpose.msra.mxu0 0
    %968 = vmatprep.subr.bf16.mxu0 0
    %969 = vmatpush1.bf16.xpose.msra.mxu0 0
    %970 = vmatprep.subr.bf16.mxu0 0
    %971 = vmatpush1.bf16.xpose.msra.mxu0 0
    %972 = vmatprep.subr.bf16.mxu0 0
    %973 = vmatpush1.bf16.xpose.msra.mxu0 0
    %974 = vmatprep.subr.bf16.mxu0 0
    %975 = vmatpush1.bf16.xpose.msra.mxu0 0
    %976 = vmatprep.subr.bf16.mxu0 0
    %977 = vmatpush1.bf16.xpose.msra.mxu0 0
    %978 = vmatprep.subr.bf16.mxu0 0
    %979 = vmatpush1.bf16.xpose.msra.mxu0 0
    %980 = vmatprep.subr.bf16.mxu0 0
    %981 = vmatpush1.bf16.xpose.msra.mxu0 0
    %982 = vmatprep.subr.bf16.mxu0 0
    %983 = vmatpush1.bf16.xpose.msra.mxu0 0
    %984 = vmatprep.mubr.bf16.mxu0 0
    %985 = vmatmul.mubr.bf16.gmra.mrb[0].mxu0 %v947
    %v986 = vpop.f32.mrb[0].mxu0
    %v987 = vadd.f32 0.0, %v986
    %v988 = vpop.f32.mrb[0].mxu0
    %v989 = vpop.f32.mrb[0].mxu0
    %v990 = vpop.f32.mrb[0].mxu0
    %991 = vdwg.mxu0
    %v992 = vsel %vm236, %v937, -inf
    %993 = vmax.xlane.f32.xlu0 %v992
    %v994 = vpop.xlane.xlu0 %993
    %v995 = vsel %vm236, %v987, -inf
    %996 = vmax.xlane.f32.xlu0 %v995
    %v997 = vpop.xlane.xlu0 %996
    %v998 = vsub.f32 %v937, %v994
    %v999 = vsub.f32 %v987, %v997
    %v1000 = vmul.f32 %v998, 1.442695
    %v1001 = vpow.pop %v1000
    %v1002 = vmul.f32 %v999, 1.442695
    %v1003 = vpow.pop %v1002
    %v1004 = vsel %vm236, %v1001, 0.0
    %1005 = vadd.xlane.f32.xlu0 %v1004
    %v1006 = vpop.xlane.xlu0 %1005
    %v1007 = vsel %vm236, %v1003, 0.0
    %1008 = vadd.xlane.f32.xlu0 %v1007
    %v1009 = vpop.xlane.xlu0 %1008
    %v1010 = vrcp.pop %v1006
    %v1011 = vrcp.pop %v1009
    %v1012 = vmul.f32 %v1001, %v1010
    %v1013 = vmul.f32 %v1003, %v1011
    %v1014 = vpack.c.bf16 %v1012, %v1012
    %v1015 = vpack.c.bf16 %v1013, %v1013
    %1016 = vrot.lane.b32.xlu0 %v232, 40
    %v1017 = vpop.permute.xlu0 %1016
    %v1019 = vsel %vm236, %v1014, 0
    %v1022 = vsel %vm360, %v1017, 0
    %1024 = vmatprep.subr.bf16.mxu0 0
    %1025 = vmatpush1.bf16.msra.mxu0 %v1022
    %1026 = vmatprep.subr.bf16.mxu0 0
    %1027 = vmatpush1.bf16.msra.mxu0 0
    %1028 = vmatprep.subr.bf16.mxu0 0
    %1029 = vmatpush1.bf16.msra.mxu0 0
    %1030 = vmatprep.subr.bf16.mxu0 0
    %1031 = vmatpush1.bf16.msra.mxu0 0
    %1032 = vmatprep.subr.bf16.mxu0 0
    %1033 = vmatpush1.bf16.msra.mxu0 0
    %1034 = vmatprep.subr.bf16.mxu0 0
    %1035 = vmatpush1.bf16.msra.mxu0 0
    %1036 = vmatprep.subr.bf16.mxu0 0
    %1037 = vmatpush1.bf16.msra.mxu0 0
    %1038 = vmatprep.subr.bf16.mxu0 0
    %1039 = vmatpush1.bf16.msra.mxu0 0
    %1040 = vmatprep.subr.bf16.mxu0 0
    %1041 = vmatpush1.bf16.msra.mxu0 0
    %1042 = vmatprep.subr.bf16.mxu0 0
    %1043 = vmatpush1.bf16.msra.mxu0 0
    %1044 = vmatprep.subr.bf16.mxu0 0
    %1045 = vmatpush1.bf16.msra.mxu0 0
    %1046 = vmatprep.subr.bf16.mxu0 0
    %1047 = vmatpush1.bf16.msra.mxu0 0
    %1048 = vmatprep.subr.bf16.mxu0 0
    %1049 = vmatpush1.bf16.msra.mxu0 0
    %1050 = vmatprep.subr.bf16.mxu0 0
    %1051 = vmatpush1.bf16.msra.mxu0 0
    %1052 = vmatprep.subr.bf16.mxu0 0
    %1053 = vmatpush1.bf16.msra.mxu0 0
    %1054 = vmatprep.subr.bf16.mxu0 0
    %1055 = vmatpush1.bf16.msra.mxu0 0
    %1056 = vmatprep.mubr.bf16.mxu0 0
    %1057 = vmatmul.mubr.bf16.gmra.mrb[0].mxu0 %v1019
    %v1058 = vpop.f32.mrb[0].mxu0
    %v1059 = vadd.f32 0.0, %v1058
    %v1060 = vpop.f32.mrb[0].mxu0
    %v1061 = vpop.f32.mrb[0].mxu0
    %v1062 = vpop.f32.mrb[0].mxu0
    %1063 = vdwg.mxu0
    %1064 = vrot.lane.b32.xlu0 %v233, 40
    %v1065 = vpop.permute.xlu0 %1064
    %v1067 = vsel %vm236, %v1015, 0
    %v1070 = vsel %vm360, %v1065, 0
    %1072 = vmatprep.subr.bf16.mxu0 0
    %1073 = vmatpush1.bf16.msra.mxu0 %v1070
    %1074 = vmatprep.subr.bf16.mxu0 0
    %1075 = vmatpush1.bf16.msra.mxu0 0
    %1076 = vmatprep.subr.bf16.mxu0 0
    %1077 = vmatpush1.bf16.msra.mxu0 0
    %1078 = vmatprep.subr.bf16.mxu0 0
    %1079 = vmatpush1.bf16.msra.mxu0 0
    %1080 = vmatprep.subr.bf16.mxu0 0
    %1081 = vmatpush1.bf16.msra.mxu0 0
    %1082 = vmatprep.subr.bf16.mxu0 0
    %1083 = vmatpush1.bf16.msra.mxu0 0
    %1084 = vmatprep.subr.bf16.mxu0 0
    %1085 = vmatpush1.bf16.msra.mxu0 0
    %1086 = vmatprep.subr.bf16.mxu0 0
    %1087 = vmatpush1.bf16.msra.mxu0 0
    %1088 = vmatprep.subr.bf16.mxu0 0
    %1089 = vmatpush1.bf16.msra.mxu0 0
    %1090 = vmatprep.subr.bf16.mxu0 0
    %1091 = vmatpush1.bf16.msra.mxu0 0
    %1092 = vmatprep.subr.bf16.mxu0 0
    %1093 = vmatpush1.bf16.msra.mxu0 0
    %1094 = vmatprep.subr.bf16.mxu0 0
    %1095 = vmatpush1.bf16.msra.mxu0 0
    %1096 = vmatprep.subr.bf16.mxu0 0
    %1097 = vmatpush1.bf16.msra.mxu0 0
    %1098 = vmatprep.subr.bf16.mxu0 0
    %1099 = vmatpush1.bf16.msra.mxu0 0
    %1100 = vmatprep.subr.bf16.mxu0 0
    %1101 = vmatpush1.bf16.msra.mxu0 0
    %1102 = vmatprep.subr.bf16.mxu0 0
    %1103 = vmatpush1.bf16.msra.mxu0 0
    %1104 = vmatprep.mubr.bf16.mxu0 0
    %1105 = vmatmul.mubr.bf16.gmra.mrb[0].mxu0 %v1067
    %v1106 = vpop.f32.mrb[0].mxu0
    %v1107 = vadd.f32 0.0, %v1106
    %v1108 = vpop.f32.mrb[0].mxu0
    %v1109 = vpop.f32.mrb[0].mxu0
    %v1110 = vpop.f32.mrb[0].mxu0
    %1111 = vdwg.mxu0
    %1114 = vrot.lane.b32.xlu0 %v619, 8
    %v1115 = vpop.permute.xlu0 %1114
    %1116 = vrot.lane.b32.xlu0 %v667, 8
    %v1117 = vpop.permute.xlu0 %1116
    %1122 = vrot.lane.b32.xlu0 %v839, 16
    %v1123 = vpop.permute.xlu0 %1122
    %1124 = vrot.lane.b32.xlu0 %v887, 16
    %v1125 = vpop.permute.xlu0 %1124
    %1130 = vrot.lane.b32.xlu0 %v1059, 24
    %v1131 = vpop.permute.xlu0 %1130
    %1132 = vrot.lane.b32.xlu0 %v1107, 24
    %v1133 = vpop.permute.xlu0 %1132
    %v1136 = vsel %vm236, %v399, %v1115
    %v1137 = vsel %vm236, %v447, %v1117
    %vm1138 = vcmask 130048
    %v1139 = vsel %vm1138, %v1136, %v1123
    %v1140 = vsel %vm1138, %v1137, %v1125
    %vm1141 = vcmask 195584
    %v1142 = vsel %vm1141, %v1139, %v1131
    %v1143 = vsel %vm1141, %v1140, %v1133
    %v1144 = vpack.c.bf16 %v1143, %v1142
    %v1145 = vld [vmem:[%s3] sm:$0xf]
    %v1146 = vld [vmem:[%s3 + $0x4] sm:$0xf]
    %v1147 = vld [vmem:[%s3 + $0x8] sm:$0xf]
    %v1148 = vld [vmem:[%s3 + $0xc] sm:$0xf]
    %v1149 = vld [vmem:[%s4] sm:$0x1]
    %v1151 = vlaneseq
    %v1152 = vshrl.u32 %v1151, 7
    %v1153 = vsub.s32 0, %v1152
    %v1154 = vrot.slane %v1149, %v1153
    %v1160 = vunpack.c.l.b16 %v1145
    %v1161 = vunpack.c.l.b16 %v1146
    %v1162 = vunpack.c.l.b16 %v1147
    %v1163 = vunpack.c.l.b16 %v1148
    %v1164 = vpack.c.b16 %v1161, %v1160
    %v1165 = vpack.c.b16 %v1163, %v1162
    %v1169 = vsel %vm116, %v1144, 0
    %1171 = vmatprep.subr.bf16.mxu0 0
    %1172 = vmatpush1.bf16.msra.mxu0 %v1164
    %1173 = vmatprep.subr.bf16.mxu0 0
    %1174 = vmatpush1.bf16.msra.mxu0 %v1165
    %1175 = vmatprep.subr.bf16.mxu0 0
    %1176 = vmatpush1.bf16.msra.mxu0 0
    %1177 = vmatprep.subr.bf16.mxu0 0
    %1178 = vmatpush1.bf16.msra.mxu0 0
    %1179 = vmatprep.subr.bf16.mxu0 0
    %1180 = vmatpush1.bf16.msra.mxu0 0
    %1181 = vmatprep.subr.bf16.mxu0 0
    %1182 = vmatpush1.bf16.msra.mxu0 0
    %1183 = vmatprep.subr.bf16.mxu0 0
    %1184 = vmatpush1.bf16.msra.mxu0 0
    %1185 = vmatprep.subr.bf16.mxu0 0
    %1186 = vmatpush1.bf16.msra.mxu0 0
    %1187 = vmatprep.subr.bf16.mxu0 0
    %1188 = vmatpush1.bf16.msra.mxu0 0
    %1189 = vmatprep.subr.bf16.mxu0 0
    %1190 = vmatpush1.bf16.msra.mxu0 0
    %1191 = vmatprep.subr.bf16.mxu0 0
    %1192 = vmatpush1.bf16.msra.mxu0 0
    %1193 = vmatprep.subr.bf16.mxu0 0
    %1194 = vmatpush1.bf16.msra.mxu0 0
    %1195 = vmatprep.subr.bf16.mxu0 0
    %1196 = vmatpush1.bf16.msra.mxu0 0
    %1197 = vmatprep.subr.bf16.mxu0 0
    %1198 = vmatpush1.bf16.msra.mxu0 0
    %1199 = vmatprep.subr.bf16.mxu0 0
    %1200 = vmatpush1.bf16.msra.mxu0 0
    %1201 = vmatprep.subr.bf16.mxu0 0
    %1202 = vmatpush1.bf16.msra.mxu0 0
    %1203 = vmatprep.mubr.bf16.mxu0 0
    %1204 = vmatmul.mubr.bf16.gmra.mrb[0].mxu0 %v1169
    %v1205 = vpop.f32.mrb[0].mxu0
    %v1206 = vadd.f32 %v1154, %v1205
    %v1207 = vpop.f32.mrb[0].mxu0
    %v1208 = vpop.f32.mrb[0].mxu0
    %v1209 = vadd.f32 %v1154, %v1208
    %v1210 = vpop.f32.mrb[0].mxu0
    %1211 = vdwg.mxu0
    %v1212 = vpack.c.bf16 %v1209, %v1206
    %v1213 = vld [vmem:[#allocation2] sm:$0xf]
    %v1214 = vld [vmem:[#allocation2 + $0x4] sm:$0xf]
    %v1215 = vld [vmem:[#allocation2 + $0x8] sm:$0xf]
    %v1216 = vld [vmem:[#allocation2 + $0xc] sm:$0xf]
    %v1217 = vld [vmem:[#allocation5] sm:$0x1]
    %v1219 = vlaneseq
    %v1220 = vshrl.u32 %v1219, 7
    %v1221 = vsub.s32 0, %v1220
    %v1222 = vrot.slane %v1217, %v1221
    %v1228 = vunpack.c.l.b16 %v1213
    %v1229 = vunpack.c.l.b16 %v1214
    %v1230 = vunpack.c.l.b16 %v1215
    %v1231 = vunpack.c.l.b16 %v1216
    %v1232 = vpack.c.b16 %v1229, %v1228
    %v1233 = vpack.c.b16 %v1231, %v1230
    %v1237 = vsel %vm116, %v1212, 0
    %1239 = vmatprep.subr.bf16.mxu0 0
    %1240 = vmatpush1.bf16.msra.mxu0 %v1232
    %1241 = vmatprep.subr.bf16.mxu0 0
    %1242 = vmatpush1.bf16.msra.mxu0 %v1233
    %1243 = vmatprep.subr.bf16.mxu0 0
    %1244 = vmatpush1.bf16.msra.mxu0 0
    %1245 = vmatprep.subr.bf16.mxu0 0
    %1246 = vmatpush1.bf16.msra.mxu0 0
    %1247 = vmatprep.subr.bf16.mxu0 0
    %1248 = vmatpush1.bf16.msra.mxu0 0
    %1249 = vmatprep.subr.bf16.mxu0 0
    %1250 = vmatpush1.bf16.msra.mxu0 0
    %1251 = vmatprep.subr.bf16.mxu0 0
    %1252 = vmatpush1.bf16.msra.mxu0 0
    %1253 = vmatprep.subr.bf16.mxu0 0
    %1254 = vmatpush1.bf16.msra.mxu0 0
    %1255 = vmatprep.subr.bf16.mxu0 0
    %1256 = vmatpush1.bf16.msra.mxu0 0
    %1257 = vmatprep.subr.bf16.mxu0 0
    %1258 = vmatpush1.bf16.msra.mxu0 0
    %1259 = vmatprep.subr.bf16.mxu0 0
    %1260 = vmatpush1.bf16.msra.mxu0 0
    %1261 = vmatprep.subr.bf16.mxu0 0
    %1262 = vmatpush1.bf16.msra.mxu0 0
    %1263 = vmatprep.subr.bf16.mxu0 0
    %1264 = vmatpush1.bf16.msra.mxu0 0
    %1265 = vmatprep.subr.bf16.mxu0 0
    %1266 = vmatpush1.bf16.msra.mxu0 0
    %1267 = vmatprep.subr.bf16.mxu0 0
    %1268 = vmatpush1.bf16.msra.mxu0 0
    %1269 = vmatprep.subr.bf16.mxu0 0
    %1270 = vmatpush1.bf16.msra.mxu0 0
    %1271 = vmatprep.mubr.bf16.mxu0 0
    %1272 = vmatmul.mubr.bf16.gmra.mrb[0].mxu0 %v1237
    %v1273 = vpop.f32.mrb[0].mxu0
    %v1274 = vadd.f32 %v1222, %v1273
    %v1275 = vpop.f32.mrb[0].mxu0
    %v1276 = vpop.f32.mrb[0].mxu0
    %v1277 = vadd.f32 %v1222, %v1276
    %v1278 = vpop.f32.mrb[0].mxu0
    %1279 = vdwg.mxu0
    %v1280 = vadd.f32 %v1206, %v1274
    %v1281 = vadd.f32 %v1209, %v1277
    %v1282 = vld [vmem:[#allocation10] sm:$0x1]
    %v1283 = vld [vmem:[%s10] sm:$0x1]
    %v1284 = vsel %vm116, %v1280, 0.0
    %1285 = vadd.xlane.f32.xlu0 %v1284
    %v1286 = vpop.xlane.xlu0 %1285
    %v1287 = vsel %vm116, %v1281, 0.0
    %1288 = vadd.xlane.f32.xlu0 %v1287
    %v1289 = vpop.xlane.xlu0 %1288
    %v1290 = vmul.f32 %v1286, %v123
    %v1291 = vmul.f32 %v1289, %v123
    %v1292 = vsub.f32 %v1280, %v1290
    %v1293 = vsub.f32 %v1281, %v1291
    %v1294 = vmul.f32 %v1292, %v1292
    %v1295 = vmul.f32 %v1293, %v1293
    %v1296 = vsel %vm116, %v1294, 0.0
    %1297 = vadd.xlane.f32.xlu0 %v1296
    %v1298 = vpop.xlane.xlu0 %1297
    %v1299 = vsel %vm116, %v1295, 0.0
    %1300 = vadd.xlane.f32.xlu0 %v1299
    %v1301 = vpop.xlane.xlu0 %1300
    %v1302 = vmul.f32 %v1298, %v123
    %v1303 = vmul.f32 %v1301, %v123
    %v1304 = vadd.f32 %v1302, 1e-05
    %v1305 = vadd.f32 %v1303, 1e-05
    %v1306 = vrsqrt.pop %v1304
    %v1307 = vrsqrt.pop %v1305
    %v1308 = vmul.f32 %v1292, %v1306
    %v1309 = vmul.f32 %v1293, %v1307
    %v1311 = vlaneseq
    %v1312 = vshrl.u32 %v1311, 7
    %v1313 = vsub.s32 0, %v1312
    %v1314 = vrot.slane %v1282, %v1313
    %v1316 = vmul.f32 %v1308, %v1314
    %v1317 = vmul.f32 %v1309, %v1314
    %v1319 = vlaneseq
    %v1320 = vshrl.u32 %v1319, 7
    %v1321 = vsub.s32 0, %v1320
    %v1322 = vrot.slane %v1283, %v1321
    %v1324 = vadd.f32 %v1316, %v1322
    %v1325 = vadd.f32 %v1317, %v1322
    %v1326 = vpack.c.bf16 %v1325, %v1324
    %v1327 = vld [vmem:[%s11] sm:$0xf]
    %v1328 = vld [vmem:[%s11 + $0x4] sm:$0xf]
    %v1329 = vld [vmem:[%s11 + $0x8] sm:$0xf]
    %v1330 = vld [vmem:[%s11 + $0xc] sm:$0xf]
    %v1331 = vld [vmem:[%s12] sm:$0x1]
    %v1333 = vlaneseq
    %v1334 = vshrl.u32 %v1333, 7
    %v1335 = vsub.s32 0, %v1334
    %v1336 = vrot.slane %v1331, %v1335
    %v1342 = vunpack.c.l.b16 %v1327
    %v1343 = vunpack.c.l.b16 %v1328
    %v1344 = vunpack.c.l.b16 %v1329
    %v1345 = vunpack.c.l.b16 %v1330
    %v1346 = vpack.c.b16 %v1343, %v1342
    %v1347 = vpack.c.b16 %v1345, %v1344
    %v1351 = vsel %vm116, %v1326, 0
    %1353 = vmatprep.subr.bf16.mxu0 0
    %1354 = vmatpush1.bf16.msra.mxu0 %v1346
    %1355 = vmatprep.subr.bf16.mxu0 0
    %1356 = vmatpush1.bf16.msra.mxu0 %v1347
    %1357 = vmatprep.subr.bf16.mxu0 0
    %1358 = vmatpush1.bf16.msra.mxu0 0
    %1359 = vmatprep.subr.bf16.mxu0 0
    %1360 = vmatpush1.bf16.msra.mxu0 0
    %1361 = vmatprep.subr.bf16.mxu0 0
    %1362 = vmatpush1.bf16.msra.mxu0 0
    %1363 = vmatprep.subr.bf16.mxu0 0
    %1364 = vmatpush1.bf16.msra.mxu0 0
    %1365 = vmatprep.subr.bf16.mxu0 0
    %1366 = vmatpush1.bf16.msra.mxu0 0
    %1367 = vmatprep.subr.bf16.mxu0 0
    %1368 = vmatpush1.bf16.msra.mxu0 0
    %1369 = vmatprep.subr.bf16.mxu0 0
    %1370 = vmatpush1.bf16.msra.mxu0 0
    %1371 = vmatprep.subr.bf16.mxu0 0
    %1372 = vmatpush1.bf16.msra.mxu0 0
    %1373 = vmatprep.subr.bf16.mxu0 0
    %1374 = vmatpush1.bf16.msra.mxu0 0
    %1375 = vmatprep.subr.bf16.mxu0 0
    %1376 = vmatpush1.bf16.msra.mxu0 0
    %1377 = vmatprep.subr.bf16.mxu0 0
    %1378 = vmatpush1.bf16.msra.mxu0 0
    %1379 = vmatprep.subr.bf16.mxu0 0
    %1380 = vmatpush1.bf16.msra.mxu0 0
    %1381 = vmatprep.subr.bf16.mxu0 0
    %1382 = vmatpush1.bf16.msra.mxu0 0
    %1383 = vmatprep.subr.bf16.mxu0 0
    %1384 = vmatpush1.bf16.msra.mxu0 0
    %1385 = vmatprep.mubr.bf16.mxu0 0
    %1386 = vmatmul.mubr.bf16.gmra.mrb[0].mxu0 %v1351
    %v1387 = vpop.f32.mrb[0].mxu0
    %v1388 = vadd.f32 %v1336, %v1387
    %v1389 = vpop.f32.mrb[0].mxu0
    %v1390 = vpop.f32.mrb[0].mxu0
    %v1391 = vadd.f32 %v1336, %v1390
    %v1392 = vpop.f32.mrb[0].mxu0
    %1393 = vdwg.mxu0
    %v1394 = vmax.f32 %v1388, 0.0
    %v1395 = vmax.f32 %v1391, 0.0
    %v1396 = vpack.c.bf16 %v1395, %v1394
    %v1397 = vld [vmem:[%s13] sm:$0xf]
    %v1398 = vld [vmem:[%s13 + $0x4] sm:$0xf]
    %v1399 = vld [vmem:[%s13 + $0x8] sm:$0xf]
    %v1400 = vld [vmem:[%s13 + $0xc] sm:$0xf]
    %v1401 = vld [vmem:[%s13 + $0x10] sm:$0xf]
    %v1402 = vld [vmem:[%s13 + $0x14] sm:$0xf]
    %v1403 = vld [vmem:[%s13 + $0x18] sm:$0xf]
    %v1404 = vld [vmem:[%s13 + $0x1c] sm:$0xf]
    %v1405 = vld [vmem:[%s14] sm:$0x1]
    %v1407 = vlaneseq
    %v1408 = vshrl.u32 %v1407, 7
    %v1409 = vsub.s32 0, %v1408
    %v1410 = vrot.slane %v1405, %v1409
    %v1420 = vunpack.c.l.b16 %v1397
    %v1421 = vunpack.c.l.b16 %v1398
    %v1422 = vunpack.c.l.b16 %v1399
    %v1423 = vunpack.c.l.b16 %v1400
    %v1424 = vunpack.c.l.b16 %v1401
    %v1425 = vunpack.c.l.b16 %v1402
    %v1426 = vunpack.c.l.b16 %v1403
    %v1427 = vunpack.c.l.b16 %v1404
    %v1428 = vpack.c.b16 %v1421, %v1420
    %v1429 = vpack.c.b16 %v1423, %v1422
    %v1430 = vpack.c.b16 %v1425, %v1424
    %v1431 = vpack.c.b16 %v1427, %v1426
    %vm1436 = vcmask 523264
    %v1438 = vsel %vm1436, %v1396, 0
    %1440 = vmatprep.subr.bf16.mxu0 0
    %1441 = vmatpush1.bf16.msra.mxu0 %v1428
    %1442 = vmatprep.subr.bf16.mxu0 0
    %1443 = vmatpush1.bf16.msra.mxu0 %v1429
    %1444 = vmatprep.subr.bf16.mxu0 0
    %1445 = vmatpush1.bf16.msra.mxu0 %v1430
    %1446 = vmatprep.subr.bf16.mxu0 0
    %1447 = vmatpush1.bf16.msra.mxu0 %v1431
    %1448 = vmatprep.subr.bf16.mxu0 0
    %1449 = vmatpush1.bf16.msra.mxu0 0
    %1450 = vmatprep.subr.bf16.mxu0 0
    %1451 = vmatpush1.bf16.msra.mxu0 0
    %1452 = vmatprep.subr.bf16.mxu0 0
    %1453 = vmatpush1.bf16.msra.mxu0 0
    %1454 = vmatprep.subr.bf16.mxu0 0
    %1455 = vmatpush1.bf16.msra.mxu0 0
    %1456 = vmatprep.subr.bf16.mxu0 0
    %1457 = vmatpush1.bf16.msra.mxu0 0
    %1458 = vmatprep.subr.bf16.mxu0 0
    %1459 = vmatpush1.bf16.msra.mxu0 0
    %1460 = vmatprep.subr.bf16.mxu0 0
    %1461 = vmatpush1.bf16.msra.mxu0 0
    %1462 = vmatprep.subr.bf16.mxu0 0
    %1463 = vmatpush1.bf16.msra.mxu0 0
    %1464 = vmatprep.subr.bf16.mxu0 0
    %1465 = vmatpush1.bf16.msra.mxu0 0
    %1466 = vmatprep.subr.bf16.mxu0 0
    %1467 = vmatpush1.bf16.msra.mxu0 0
    %1468 = vmatprep.subr.bf16.mxu0 0
    %1469 = vmatpush1.bf16.msra.mxu0 0
    %1470 = vmatprep.subr.bf16.mxu0 0
    %1471 = vmatpush1.bf16.msra.mxu0 0
    %1472 = vmatprep.mubr.bf16.mxu0 0
    %1473 = vmatmul.mubr.bf16.gmra.mrb[0].mxu0 %v1438
    %v1474 = vpop.f32.mrb[0].mxu0
    %v1475 = vadd.f32 %v1410, %v1474
    %v1476 = vpop.f32.mrb[0].mxu0
    %v1477 = vpop.f32.mrb[0].mxu0
    %v1478 = vadd.f32 %v1410, %v1477
    %v1479 = vpop.f32.mrb[0].mxu0
    %1480 = vdwg.mxu0
    %v1481 = vadd.f32 %v1324, %v1475
    %v1482 = vadd.f32 %v1325, %v1478
    %1483 = vst.msk [vmem:[#allocation11] sm:$0xff] %vm116, %v1481
    %1484 = vst.msk [vmem:[#allocation11 + $0x8] sm:$0xff] %vm116, %v1482
    // Predicated region
    $region82: #{tpu_custom_call.1} parent=1 // pred_check
      _
    $region83: #{tpu_custom_call.1} parent=1 // pred_check_branch
      %1486 = sbr.rel (0) target = $region85
    $region84: #{tpu_custom_call.1} parent=1 // pred_region
      %s1488 = ssub.s32 256, 256
      %1489 = vsyncadd [#allocation4], %s1488
      %s1490 = sshll.u32 [#allocation11], 4
      %s1491 = int_to_ptr.vmem [resolvable:$true] %s1490
      %1496 = dma.vmem_to_hbm [thread:$0]  %s1491, 256, %s15, [#allocation4], 128, 128, 8
    $region85: #{tpu_custom_call.1} parent=1 // pred_fallthru
      _
    // Predicated region
    $region86: #{tpu_custom_call.1} parent=1 // pred_check
      _
    $region87: #{tpu_custom_call.1} parent=1 // pred_check_branch
      %1498 = sbr.rel (0) target = $region89
    $region88: #{tpu_custom_call.1} parent=1 // pred_region
      %1499 = dma.done [#allocation4], 256
    $region89: #{tpu_custom_call.1} parent=1 // pred_fallthru
      _
    %1500 = vsyncpa [#allocation3], 1
    %1501 = vsyncpa [#allocation6], 1
    %1502 = vsyncpa [#allocation9], 1
    %1503 = vsyncpa [#allocation4], 1

</llo_original>
